<compile_context>
chip_gen: v7x
topology: tpu7x:2x2x1
jax: 0.10.0
libtpu: 0.0.40
codegen_flags: <defaults>
</compile_context>

<pallas_src>
import jax
import jax.numpy as jnp
from jax.experimental import pallas as pl
from jax.experimental.pallas import tpu as pltpu


def _round_up(x, m):
    return (x + m - 1) // m * m


# ----------------------------------------------------------------------------
# Pallas kernels
# ----------------------------------------------------------------------------
def _matmul_bias_kernel(x_ref, w_ref, b_ref, o_ref):
    """o = x @ w + b with bf16 MXU operands and f32 accumulation."""
    x = x_ref[...].astype(w_ref.dtype)
    o_ref[...] = jnp.dot(x, w_ref[...],
                         preferred_element_type=jnp.float32) + b_ref[...]


def matmul_bias(x, w, b, *, tm=256, tn=512):
    """Tiled (N, K) @ (K, V) + (1, V) -> (N, V) f32, grid-pipelined."""
    N, K = x.shape
    V = w.shape[-1]
    tm = min(tm, N)
    tn = min(tn, V)
    grid = (pl.cdiv(N, tm), pl.cdiv(V, tn))
    return pl.pallas_call(
        _matmul_bias_kernel,
        out_shape=jax.ShapeDtypeStruct((N, V), jnp.float32),
        grid_spec=pltpu.PrefetchScalarGridSpec(
            num_scalar_prefetch=0,
            grid=grid,
            in_specs=[pl.BlockSpec((tm, K), lambda i, j: (i, 0)),
                      pl.BlockSpec((K, tn), lambda i, j: (0, j)),
                      pl.BlockSpec((1, tn), lambda i, j: (0, j))],
            out_specs=pl.BlockSpec((tm, tn), lambda i, j: (i, j)),
        ),
        compiler_params=pltpu.CompilerParams(
            dimension_semantics=("parallel", "parallel")),
    )(x, w, b)


def _gru_recurrence_kernel(gi_ref, h0_ref, whh_ref, bhh_ref, out_ref, h_scratch):
    """One GRU timestep; grid streams over (batch_block, time).

    gi_ref:  (1, TB, 3H) precomputed x_t @ W_ih + b_ih for this step (f32)
    h0_ref:  (TB, H)     initial hidden state (resident)
    whh_ref: (H, 3H)     recurrent weights (bf16, resident)
    bhh_ref: (1, 3H)     recurrent bias (f32, resident)
    out_ref: (1, TB, H)  hidden state written per step
    h_scratch: (TB, H)   f32 carried hidden state (persists across grid steps)
    """
    H = h0_ref.shape[-1]
    t = pl.program_id(1)

    @pl.when(t == 0)
    def _():
        h_scratch[...] = h0_ref[...]

    h = h_scratch[...]
    gh = jnp.dot(h.astype(whh_ref.dtype), whh_ref[...],
                 preferred_element_type=jnp.float32) + bhh_ref[...]
    gi = gi_ref[0]
    # H is a multiple of 128 (padded) -> gate slices are lane-tile aligned.
    r = jax.nn.sigmoid(gi[:, 0:H] + gh[:, 0:H])
    z = jax.nn.sigmoid(gi[:, H:2 * H] + gh[:, H:2 * H])
    n = jnp.tanh(gi[:, 2 * H:3 * H] + r * gh[:, 2 * H:3 * H])
    h_new = (1.0 - z) * n + z * h
    h_scratch[...] = h_new
    out_ref[0] = h_new


def gru_layer(x_seq, h0, w_ih, w_hh, b_ih, b_hh, *, batch_block=None):
    """One GRU layer over a full (padded, tile-aligned) sequence.

    x_seq: (T, B, In) f32;  h0: (B, H) f32;  w_*: bf16;  b_*: (1, 3H) f32.
    Returns (out_seq (T, B, H) f32, final hidden (B, H) f32).
    """
    T, B, In = x_seq.shape
    H = h0.shape[-1]

    # (1) Input-side gate matmul for all timesteps at once (big MXU matmul).
    gi = matmul_bias(x_seq.reshape(T * B, In), w_ih, b_ih).reshape(T, B, 3 * H)

    # (2) Serial recurrence, streamed over time; batch-parallel outer grid axis.
    tb = B if batch_block is None else min(batch_block, B)
    grid = (B // tb, T)
    out_seq = pl.pallas_call(
        _gru_recurrence_kernel,
        out_shape=jax.ShapeDtypeStruct((T, B, H), jnp.float32),
        grid_spec=pltpu.PrefetchScalarGridSpec(
            num_scalar_prefetch=0,
            grid=grid,
            in_specs=[
                pl.BlockSpec((1, tb, 3 * H), lambda b, t: (t, b, 0)),
                pl.BlockSpec((tb, H), lambda b, t: (b, 0)),
                pl.BlockSpec((H, 3 * H), lambda b, t: (0, 0)),
                pl.BlockSpec((1, 3 * H), lambda b, t: (0, 0)),
            ],
            out_specs=pl.BlockSpec((1, tb, H), lambda b, t: (t, b, 0)),
            scratch_shapes=[pltpu.VMEM((tb, H), jnp.float32)],
        ),
        compiler_params=pltpu.CompilerParams(
            dimension_semantics=("parallel", "arbitrary")),
    )(gi, h0, w_hh, b_hh)
    return out_seq, out_seq[-1]


# ----------------------------------------------------------------------------
# Model glue (encoder / decoder / EncoderDecoder.forward), padded internals
# ----------------------------------------------------------------------------
def gru_stack(x_seq, h0_layers, layer_params):
    out = x_seq
    finals = []
    for l, (w_ih, w_hh, b_ih, b_hh) in enumerate(layer_params):
        out, hT = gru_layer(out, h0_layers[l], w_ih, w_hh, b_ih, b_hh)
        finals.append(hT)
    return out, jnp.stack(finals, axis=0)


def encoder_forward(pp, enc_X, dims):
    B, T = enc_X.shape
    Bp, Hp = dims["Bp"], dims["Hp"]
    L = len(pp["enc_gru"])
    emb = jnp.take(pp["enc_embed"], enc_X, axis=0)          # (B, T, Ep)
    x = jnp.transpose(emb, (1, 0, 2))                        # (T, B, Ep)
    x = jnp.pad(x, ((0, 0), (0, Bp - B), (0, 0)))            # (T, Bp, Ep)
    h0 = jnp.zeros((L, Bp, Hp), jnp.float32)
    output, state = gru_stack(x, h0, pp["enc_gru"])
    return output, state


def decoder_init_state(enc_outputs):
    return enc_outputs[1]                                    # (L, Bp, Hp)


def decoder_forward(pp, dec_X, state, dims):
    B, T = dec_X.shape
    Bp = dims["Bp"]
    emb = jnp.take(pp["dec_embed"], dec_X, axis=0)           # (B, T, Ep)
    x = jnp.transpose(emb, (1, 0, 2))                        # (T, B, Ep)
    x = jnp.pad(x, ((0, 0), (0, Bp - B), (0, 0)))            # (T, Bp, Ep)
    context = jnp.broadcast_to(state[-1], (T,) + state[-1].shape)   # (T, Bp, Hp)
    x_and_context = jnp.concatenate([x, context], axis=2)    # (T, Bp, Ep+Hp)
    output, new_state = gru_stack(x_and_context, state, pp["dec_gru"])
    T_, Bp_, Hp = output.shape
    logits = matmul_bias(output.reshape(T_ * Bp_, Hp),
                         pp["dense_w"], pp["dense_b"])        # (T*Bp, Vp)
    logits = logits.reshape(T_, Bp_, -1)[:, :B, :dims["V"]]   # slice off padding
    out = jnp.transpose(logits, (1, 0, 2))                    # (B, T, V)
    new_state = new_state[:, :B, :dims["H"]]                  # (L, B, H)
    return out, new_state


def encoder_decoder_forward(pp, enc_X, dec_X, dims):
    enc_outputs = encoder_forward(pp, enc_X, dims)
    dec_state = decoder_init_state(enc_outputs)
    return decoder_forward(pp, dec_X, dec_state, dims)


# ----------------------------------------------------------------------------
# Parameter init (PyTorch-style) and tile-aligned padding / bf16 weight prep
# ----------------------------------------------------------------------------
def init_params(key, vocab_size, embed_size, num_hiddens, num_layers):
    bound = 1.0 / jnp.sqrt(jnp.float32(num_hiddens))

    def uni(k, shape):
        return jax.random.uniform(k, shape, jnp.float32, -bound, bound)

    keys = jax.random.split(key, 4 + 8 * num_layers)
    it = iter(keys)
    params = {
        "enc_embed": jax.random.normal(next(it), (vocab_size, embed_size), jnp.float32) * 0.1,
        "dec_embed": jax.random.normal(next(it), (vocab_size, embed_size), jnp.float32) * 0.1,
        "dense_w": uni(next(it), (num_hiddens, vocab_size)),
        "dense_b": uni(next(it), (1, vocab_size)),
        "enc_gru": [],
        "dec_gru": [],
    }
    for l in range(num_layers):
        in_sz = embed_size if l == 0 else num_hiddens
        params["enc_gru"].append((uni(next(it), (in_sz, 3 * num_hiddens)),
                                  uni(next(it), (num_hiddens, 3 * num_hiddens)),
                                  uni(next(it), (1, 3 * num_hiddens)),
                                  uni(next(it), (1, 3 * num_hiddens))))
    for l in range(num_layers):
        in_sz = (embed_size + num_hiddens) if l == 0 else num_hiddens
        params["dec_gru"].append((uni(next(it), (in_sz, 3 * num_hiddens)),
                                  uni(next(it), (num_hiddens, 3 * num_hiddens)),
                                  uni(next(it), (1, 3 * num_hiddens)),
                                  uni(next(it), (1, 3 * num_hiddens))))
    return params


def _pad_gate_cols(w, H, Hp):
    """Pad each of the 3 gate column-blocks [r|z|n] from H to Hp (zero fill)."""
    gates = [w[..., g * H:(g + 1) * H] for g in range(3)]
    gates = [jnp.pad(g_, [(0, 0)] * (w.ndim - 1) + [(0, Hp - H)]) for g_ in gates]
    return jnp.concatenate(gates, axis=-1)


def _pad_row_blocks(w, blocks):
    """Pad consecutive row blocks (size -> padded size), zero fill."""
    parts, r = [], 0
    for sz, psz in blocks:
        parts.append(jnp.pad(w[r:r + sz], ((0, psz - sz), (0, 0))))
        r += sz
    return jnp.concatenate(parts, axis=0)


def prepare_params(params, batch, embed_size, num_hiddens, vocab_size):
    """Zero-pad params to tile-aligned shapes; weights -> bf16, biases -> f32."""
    E, H, V = embed_size, num_hiddens, vocab_size
    Ep, Hp, Vp = _round_up(E, 128), _round_up(H, 128), _round_up(V, 128)
    Bp = _round_up(batch, 8)
    wdt = jnp.bfloat16

    def pad_gru(layer, row_blocks):
        w_ih, w_hh, b_ih, b_hh = layer
        w_ih_p = _pad_gate_cols(_pad_row_blocks(w_ih, row_blocks), H, Hp).astype(wdt)
        w_hh_p = _pad_gate_cols(_pad_row_blocks(w_hh, [(H, Hp)]), H, Hp).astype(wdt)
        return (w_ih_p, w_hh_p, _pad_gate_cols(b_ih, H, Hp), _pad_gate_cols(b_hh, H, Hp))

    pp = {
        "enc_embed": jnp.pad(params["enc_embed"], ((0, 0), (0, Ep - E))),
        "dec_embed": jnp.pad(params["dec_embed"], ((0, 0), (0, Ep - E))),
        "dense_w": jnp.pad(params["dense_w"], ((0, Hp - H), (0, Vp - V))).astype(wdt),
        "dense_b": jnp.pad(params["dense_b"], ((0, 0), (0, Vp - V))),
        "enc_gru": [],
        "dec_gru": [],
    }
    for l, layer in enumerate(params["enc_gru"]):
        rows = [(E, Ep)] if l == 0 else [(H, Hp)]
        pp["enc_gru"].append(pad_gru(layer, rows))
    for l, layer in enumerate(params["dec_gru"]):
        rows = [(E, Ep), (H, Hp)] if l == 0 else [(H, Hp)]
        pp["dec_gru"].append(pad_gru(layer, rows))
    dims = dict(E=E, Ep=Ep, H=H, Hp=Hp, V=V, Vp=Vp, Bp=Bp)
    return pp, dims


# ----------------------------------------------------------------------------
# Pure-JAX reference (mirrors kernel numerics: bf16 matmul operands, f32 acc)
# ----------------------------------------------------------------------------
def _ref_gru_layer(x_seq, h0, w_ih, w_hh, b_ih, b_hh):
    H = h0.shape[-1]
    wi = w_ih.astype(jnp.bfloat16)
    wh = w_hh.astype(jnp.bfloat16)
    h = h0
    outs = []
    for t in range(x_seq.shape[0]):
        gi = jnp.dot(x_seq[t].astype(jnp.bfloat16), wi,
                     preferred_element_type=jnp.float32) + b_ih
        gh = jnp.dot(h.astype(jnp.bfloat16), wh,
                     preferred_element_type=jnp.float32) + b_hh
        r = jax.nn.sigmoid(gi[:, :H] + gh[:, :H])
        z = jax.nn.sigmoid(gi[:, H:2 * H] + gh[:, H:2 * H])
        n = jnp.tanh(gi[:, 2 * H:] + r * gh[:, 2 * H:])
        h = (1.0 - z) * n + z * h
        outs.append(h)
    return jnp.stack(outs, 0), h


def ref_forward(params, enc_X, dec_X):
    B = enc_X.shape[0]
    H = params["enc_gru"][0][1].shape[0]
    L = len(params["enc_gru"])

    emb = jnp.take(params["enc_embed"], enc_X, axis=0)
    out = jnp.transpose(emb, (1, 0, 2))
    state = []
    for l in range(L):
        out, hT = _ref_gru_layer(out, jnp.zeros((B, H), jnp.float32),
                                 *params["enc_gru"][l])
        state.append(hT)
    state = jnp.stack(state, 0)

    emb = jnp.take(params["dec_embed"], dec_X, axis=0)
    x = jnp.transpose(emb, (1, 0, 2))
    T = x.shape[0]
    ctx = jnp.broadcast_to(state[-1], (T,) + state[-1].shape)
    out = jnp.concatenate([x, ctx], axis=2)
    new_state = []
    for l in range(L):
        out, hT = _ref_gru_layer(out, state[l], *params["dec_gru"][l])
        new_state.append(hT)
    new_state = jnp.stack(new_state, 0)
    logits = (jnp.dot(out.astype(jnp.bfloat16),
                      params["dense_w"].astype(jnp.bfloat16),
                      preferred_element_type=jnp.float32)
              + params["dense_b"]).transpose(1, 0, 2)
    return logits, new_state


# ----------------------------------------------------------------------------
if __name__ == "__main__":
    key = jax.random.PRNGKey(0)
    batch, num_steps = 2, 8
    vocab_size, embed_size, num_hiddens, num_layers = 24, 8, 32, 2

    kp, ke, kd = jax.random.split(key, 3)
    params = init_params(kp, vocab_size, embed_size, num_hiddens, num_layers)
    enc_X = jax.random.randint(ke, (batch, num_steps), 0, vocab_size, dtype=jnp.int32)
    dec_X = jax.random.randint(kd, (batch, num_steps), 0, vocab_size, dtype=jnp.int32)

    pp, dims = prepare_params(params, batch, embed_size, num_hiddens, vocab_size)

    fwd = jax.jit(lambda p, e, d: encoder_decoder_forward(p, e, d, dims))
    out, state = fwd(pp, enc_X, dec_X)
    jax.block_until_ready((out, state))

    assert out.shape == (batch, num_steps, vocab_size)
    assert state.shape == (num_layers, batch, num_hiddens)

    ref_out, ref_state = ref_forward(params, enc_X, dec_X)
    assert jnp.allclose(out, ref_out, atol=2e-2, rtol=2e-2)
    assert jnp.allclose(state, ref_state, atol=2e-2, rtol=2e-2)

    print("KERNEL_OK")
</pallas_src>

<mosaic_0001>
module attributes {stable_mosaic.version = 11 : i64} {
  func.func @_matmul_bias_kernel(%arg0: i32, %arg1: i32, %arg2: memref<64x256xf32, #tpu.memory_space<vmem>>, %arg3: memref<256x384xbf16, #tpu.memory_space<vmem>>, %arg4: memref<1x384xf32, #tpu.memory_space<vmem>>, %arg5: memref<64x384xf32, #tpu.memory_space<vmem>>) attributes {dimension_semantics = [#tpu.dimension_semantics<parallel>, #tpu.dimension_semantics<parallel>], iteration_bounds = array<i64: 1, 1>, scalar_prefetch = 0 : i64, scratch_operands = 0 : i64, tpu.core_type = #tpu.core_type<tc>, window_params = [{transform_indices = @transform_0, window_bounds = array<i64: 64, 256>}, {transform_indices = @transform_1, window_bounds = array<i64: 256, 384>}, {transform_indices = @transform_2, window_bounds = array<i64: 1, 384>}, {transform_indices = @transform_3, window_bounds = array<i64: 64, 384>}]} {
    %c0 = arith.constant 0 : index
    %c0_0 = arith.constant 0 : index
    %0 = vector.load %arg2[%c0, %c0_0] : memref<64x256xf32, #tpu.memory_space<vmem>>, vector<64x256xf32>
    %1 = arith.truncf %0 : vector<64x256xf32> to vector<64x256xbf16>
    %c0_1 = arith.constant 0 : index
    %c0_2 = arith.constant 0 : index
    %2 = vector.load %arg3[%c0_1, %c0_2] : memref<256x384xbf16, #tpu.memory_space<vmem>>, vector<256x384xbf16>
    %cst = arith.constant dense<0.000000e+00> : vector<64x384xf32>
    %3 = tpu.matmul %1, %2, %cst {dimension_numbers = #tpu.dot_dimension_numbers<[1], [0], [0], [1], [0, 0, 1, 1], [], []>} : vector<64x256xbf16>, vector<256x384xbf16>, vector<64x384xf32> -> vector<64x384xf32>
    %c0_3 = arith.constant 0 : index
    %c0_4 = arith.constant 0 : index
    %4 = vector.load %arg4[%c0_3, %c0_4] : memref<1x384xf32, #tpu.memory_space<vmem>>, vector<1x384xf32>
    %5 = vector.broadcast %4 : vector<1x384xf32> to vector<64x384xf32>
    %6 = arith.addf %3, %5 : vector<64x384xf32>
    %c0_5 = arith.constant 0 : index
    %c0_6 = arith.constant 0 : index
    %7 = vector.load %arg5[%c0_5, %c0_6] : memref<64x384xf32, #tpu.memory_space<vmem>>, vector<64x384xf32>
    tpu.vector_store %arg5[%c0_5, %c0_6], %6 {strides = array<i32>} : memref<64x384xf32, #tpu.memory_space<vmem>>, vector<64x384xf32>,
    return
  }
  func.func @transform_0(%arg0: i32, %arg1: i32) -> (i32, i32) {
    %c0_i32 = arith.constant 0 : i32
    %c0_i32_0 = arith.constant 0 : i32
    return %arg0, %c0_i32 : i32, i32
  }
  func.func @transform_1(%arg0: i32, %arg1: i32) -> (i32, i32) {
    %c0_i32 = arith.constant 0 : i32
    %c0_i32_0 = arith.constant 0 : i32
    return %c0_i32, %arg1 : i32, i32
  }
  func.func @transform_2(%arg0: i32, %arg1: i32) -> (i32, i32) {
    %c0_i32 = arith.constant 0 : i32
    %c0_i32_0 = arith.constant 0 : i32
    return %c0_i32, %arg1 : i32, i32
  }
  func.func @transform_3(%arg0: i32, %arg1: i32) -> (i32, i32) {
    %c0_i32 = arith.constant 0 : i32
    return %arg0, %arg1 : i32, i32
  }
}

module attributes {stable_mosaic.version = 11 : i64} {
  func.func @_matmul_bias_kernel(%arg0: i32, %arg1: i32, %arg2: memref<64x128xf32, #tpu.memory_space<vmem>>, %arg3: memref<128x384xbf16, #tpu.memory_space<vmem>>, %arg4: memref<1x384xf32, #tpu.memory_space<vmem>>, %arg5: memref<64x384xf32, #tpu.memory_space<vmem>>) attributes {dimension_semantics = [#tpu.dimension_semantics<parallel>, #tpu.dimension_semantics<parallel>], iteration_bounds = array<i64: 1, 1>, scalar_prefetch = 0 : i64, scratch_operands = 0 : i64, tpu.core_type = #tpu.core_type<tc>, window_params = [{transform_indices = @transform_0, window_bounds = array<i64: 64, 128>}, {transform_indices = @transform_1, window_bounds = array<i64: 128, 384>}, {transform_indices = @transform_2, window_bounds = array<i64: 1, 384>}, {transform_indices = @transform_3, window_bounds = array<i64: 64, 384>}]} {
    %c0 = arith.constant 0 : index
    %c0_0 = arith.constant 0 : index
    %0 = vector.load %arg2[%c0, %c0_0] : memref<64x128xf32, #tpu.memory_space<vmem>>, vector<64x128xf32>
    %1 = arith.truncf %0 : vector<64x128xf32> to vector<64x128xbf16>
    %c0_1 = arith.constant 0 : index
    %c0_2 = arith.constant 0 : index
    %2 = vector.load %arg3[%c0_1, %c0_2] : memref<128x384xbf16, #tpu.memory_space<vmem>>, vector<128x384xbf16>
    %cst = arith.constant dense<0.000000e+00> : vector<64x384xf32>
    %3 = tpu.matmul %1, %2, %cst {dimension_numbers = #tpu.dot_dimension_numbers<[1], [0], [0], [1], [0, 0, 1, 1], [], []>} : vector<64x128xbf16>, vector<128x384xbf16>, vector<64x384xf32> -> vector<64x384xf32>
    %c0_3 = arith.constant 0 : index
    %c0_4 = arith.constant 0 : index
    %4 = vector.load %arg4[%c0_3, %c0_4] : memref<1x384xf32, #tpu.memory_space<vmem>>, vector<1x384xf32>
    %5 = vector.broadcast %4 : vector<1x384xf32> to vector<64x384xf32>
    %6 = arith.addf %3, %5 : vector<64x384xf32>
    %c0_5 = arith.constant 0 : index
    %c0_6 = arith.constant 0 : index
    %7 = vector.load %arg5[%c0_5, %c0_6] : memref<64x384xf32, #tpu.memory_space<vmem>>, vector<64x384xf32>
    tpu.vector_store %arg5[%c0_5, %c0_6], %6 {strides = array<i32>} : memref<64x384xf32, #tpu.memory_space<vmem>>, vector<64x384xf32>,
    return
  }
  func.func @transform_0(%arg0: i32, %arg1: i32) -> (i32, i32) {
    %c0_i32 = arith.constant 0 : i32
    %c0_i32_0 = arith.constant 0 : i32
    return %arg0, %c0_i32 : i32, i32
  }
  func.func @transform_1(%arg0: i32, %arg1: i32) -> (i32, i32) {
    %c0_i32 = arith.constant 0 : i32
    %c0_i32_0 = arith.constant 0 : i32
    return %c0_i32, %arg1 : i32, i32
  }
  func.func @transform_2(%arg0: i32, %arg1: i32) -> (i32, i32) {
    %c0_i32 = arith.constant 0 : i32
    %c0_i32_0 = arith.constant 0 : i32
    return %c0_i32, %arg1 : i32, i32
  }
  func.func @transform_3(%arg0: i32, %arg1: i32) -> (i32, i32) {
    %c0_i32 = arith.constant 0 : i32
    return %arg0, %arg1 : i32, i32
  }
}

module attributes {stable_mosaic.version = 11 : i64} {
  func.func @_gru_recurrence_kernel(%arg0: i32, %arg1: i32, %arg2: memref<1x8x384xf32, #tpu.memory_space<vmem>>, %arg3: memref<8x128xf32, #tpu.memory_space<vmem>>, %arg4: memref<128x384xbf16, #tpu.memory_space<vmem>>, %arg5: memref<1x384xf32, #tpu.memory_space<vmem>>, %arg6: memref<1x8x128xf32, #tpu.memory_space<vmem>>, %arg7: memref<8x128xf32, #tpu.memory_space<vmem>>) attributes {dimension_semantics = [#tpu.dimension_semantics<parallel>, #tpu.dimension_semantics<arbitrary>], iteration_bounds = array<i64: 1, 8>, scalar_prefetch = 0 : i64, scratch_operands = 1 : i64, tpu.core_type = #tpu.core_type<tc>, window_params = [{transform_indices = @transform_0, window_bounds = array<i64: 1, 8, 384>}, {transform_indices = @transform_1, window_bounds = array<i64: 8, 128>}, {pipeline_mode = #tpu.pipeline_mode<synchronous>, transform_indices = @transform_2, window_bounds = array<i64: 128, 384>}, {pipeline_mode = #tpu.pipeline_mode<synchronous>, transform_indices = @transform_3, window_bounds = array<i64: 1, 384>}, {transform_indices = @transform_4, window_bounds = array<i64: 1, 8, 128>}]} {
    %c0_i32 = arith.constant 0 : i32
    %0 = arith.cmpi eq, %arg1, %c0_i32 : i32
    %1 = arith.extui %0 : i1 to i32
    %c0_i32_0 = arith.constant 0 : i32
    %2 = arith.cmpi ne, %1, %c0_i32_0 : i32
    scf.if %2 {
      %c0_17 = arith.constant 0 : index
      %c0_18 = arith.constant 0 : index
      %42 = vector.load %arg3[%c0_17, %c0_18] : memref<8x128xf32, #tpu.memory_space<vmem>>, vector<8x128xf32>
      %c0_19 = arith.constant 0 : index
      %c0_20 = arith.constant 0 : index
      %43 = vector.load %arg7[%c0_19, %c0_20] : memref<8x128xf32, #tpu.memory_space<vmem>>, vector<8x128xf32>
      tpu.vector_store %arg7[%c0_19, %c0_20], %42 {strides = array<i32>} : memref<8x128xf32, #tpu.memory_space<vmem>>, vector<8x128xf32>,
    } else {
    }
    %c0 = arith.constant 0 : index
    %c0_1 = arith.constant 0 : index
    %3 = vector.load %arg7[%c0, %c0_1] : memref<8x128xf32, #tpu.memory_space<vmem>>, vector<8x128xf32>
    %4 = arith.truncf %3 : vector<8x128xf32> to vector<8x128xbf16>
    %c0_2 = arith.constant 0 : index
    %c0_3 = arith.constant 0 : index
    %5 = vector.load %arg4[%c0_2, %c0_3] : memref<128x384xbf16, #tpu.memory_space<vmem>>, vector<128x384xbf16>
    %cst = arith.constant dense<0.000000e+00> : vector<8x384xf32>
    %6 = tpu.matmul %4, %5, %cst {dimension_numbers = #tpu.dot_dimension_numbers<[1], [0], [0], [1], [0, 0, 1, 1], [], []>} : vector<8x128xbf16>, vector<128x384xbf16>, vector<8x384xf32> -> vector<8x384xf32>
    %c0_4 = arith.constant 0 : index
    %c0_5 = arith.constant 0 : index
    %7 = vector.load %arg5[%c0_4, %c0_5] : memref<1x384xf32, #tpu.memory_space<vmem>>, vector<1x384xf32>
    %8 = vector.broadcast %7 : vector<1x384xf32> to vector<8x384xf32>
    %9 = arith.addf %6, %8 : vector<8x384xf32>
    %c0_6 = arith.constant 0 : index
    %c0_7 = arith.constant 0 : index
    %c0_8 = arith.constant 0 : index
    %10 = vector.load %arg2[%c0_6, %c0_7, %c0_8] : memref<1x8x384xf32, #tpu.memory_space<vmem>>, vector<1x8x384xf32>
    %11 = vector.shape_cast %10 : vector<1x8x384xf32> to vector<8x384xf32>
    %12 = vector.extract_strided_slice %11 {offsets = [0, 0], sizes = [8, 128], strides = [1, 1]} : vector<8x384xf32> to vector<8x128xf32>
    %13 = vector.extract_strided_slice %9 {offsets = [0, 0], sizes = [8, 128], strides = [1, 1]} : vector<8x384xf32> to vector<8x128xf32>
    %14 = arith.addf %12, %13 : vector<8x128xf32>
    %15 = arith.negf %14 : vector<8x128xf32>
    %16 = math.exp %15 : vector<8x128xf32>
    %cst_9 = arith.constant 1.000000e+00 : f32
    %17 = vector.broadcast %cst_9 : f32 to vector<8x128xf32>
    %18 = arith.addf %17, %16 : vector<8x128xf32>
    %19 = arith.divf %17, %18 : vector<8x128xf32>
    %20 = vector.extract_strided_slice %11 {offsets = [0, 128], sizes = [8, 128], strides = [1, 1]} : vector<8x384xf32> to vector<8x128xf32>
    %21 = vector.extract_strided_slice %9 {offsets = [0, 128], sizes = [8, 128], strides = [1, 1]} : vector<8x384xf32> to vector<8x128xf32>
    %22 = arith.addf %20, %21 : vector<8x128xf32>
    %23 = arith.negf %22 : vector<8x128xf32>
    %24 = math.exp %23 : vector<8x128xf32>
    %cst_10 = arith.constant 1.000000e+00 : f32
    %25 = vector.broadcast %cst_10 : f32 to vector<8x128xf32>
    %26 = arith.addf %25, %24 : vector<8x128xf32>
    %27 = arith.divf %25, %26 : vector<8x128xf32>
    %28 = vector.extract_strided_slice %11 {offsets = [0, 256], sizes = [8, 128], strides = [1, 1]} : vector<8x384xf32> to vector<8x128xf32>
    %29 = vector.extract_strided_slice %9 {offsets = [0, 256], sizes = [8, 128], strides = [1, 1]} : vector<8x384xf32> to vector<8x128xf32>
    %30 = arith.mulf %19, %29 : vector<8x128xf32>
    %31 = arith.addf %28, %30 : vector<8x128xf32>
    %32 = math.tanh %31 : vector<8x128xf32>
    %cst_11 = arith.constant 1.000000e+00 : f32
    %33 = vector.broadcast %cst_11 : f32 to vector<8x128xf32>
    %34 = arith.subf %33, %27 : vector<8x128xf32>
    %35 = arith.mulf %34, %32 : vector<8x128xf32>
    %36 = arith.mulf %27, %3 : vector<8x128xf32>
    %37 = arith.addf %35, %36 : vector<8x128xf32>
    %c0_12 = arith.constant 0 : index
    %c0_13 = arith.constant 0 : index
    %38 = vector.load %arg7[%c0_12, %c0_13] : memref<8x128xf32, #tpu.memory_space<vmem>>, vector<8x128xf32>
    tpu.vector_store %arg7[%c0_12, %c0_13], %37 {strides = array<i32>} : memref<8x128xf32, #tpu.memory_space<vmem>>, vector<8x128xf32>,
    %c0_14 = arith.constant 0 : index
    %c0_15 = arith.constant 0 : index
    %c0_16 = arith.constant 0 : index
    %39 = vector.load %arg6[%c0_14, %c0_15, %c0_16] : memref<1x8x128xf32, #tpu.memory_space<vmem>>, vector<1x8x128xf32>
    %40 = vector.shape_cast %39 : vector<1x8x128xf32> to vector<8x128xf32>
    %41 = vector.shape_cast %37 : vector<8x128xf32> to vector<1x8x128xf32>
    tpu.vector_store %arg6[%c0_14, %c0_15, %c0_16], %41 {strides = array<i32>} : memref<1x8x128xf32, #tpu.memory_space<vmem>>, vector<1x8x128xf32>,
    return
  }
  func.func @transform_0(%arg0: i32, %arg1: i32) -> (i32, i32, i32) {
    %c0_i32 = arith.constant 0 : i32
    %c0_i32_0 = arith.constant 0 : i32
    return %arg1, %arg0, %c0_i32 : i32, i32, i32
  }
  func.func @transform_1(%arg0: i32, %arg1: i32) -> (i32, i32) {
    %c0_i32 = arith.constant 0 : i32
    %c0_i32_0 = arith.constant 0 : i32
    return %arg0, %c0_i32 : i32, i32
  }
  func.func @transform_2(%arg0: i32, %arg1: i32) -> (i32, i32) {
    %c0_i32 = arith.constant 0 : i32
    %c0_i32_0 = arith.constant 0 : i32
    %c0_i32_1 = arith.constant 0 : i32
    return %c0_i32, %c0_i32_0 : i32, i32
  }
  func.func @transform_3(%arg0: i32, %arg1: i32) -> (i32, i32) {
    %c0_i32 = arith.constant 0 : i32
    %c0_i32_0 = arith.constant 0 : i32
    %c0_i32_1 = arith.constant 0 : i32
    return %c0_i32, %c0_i32_0 : i32, i32
  }
  func.func @transform_4(%arg0: i32, %arg1: i32) -> (i32, i32, i32) {
    %c0_i32 = arith.constant 0 : i32
    %c0_i32_0 = arith.constant 0 : i32
    return %arg1, %arg0, %c0_i32 : i32, i32, i32
  }
}

module attributes {stable_mosaic.version = 11 : i64} {
  func.func @_matmul_bias_kernel(%arg0: i32, %arg1: i32, %arg2: memref<64x128xf32, #tpu.memory_space<vmem>>, %arg3: memref<128x128xbf16, #tpu.memory_space<vmem>>, %arg4: memref<1x128xf32, #tpu.memory_space<vmem>>, %arg5: memref<64x128xf32, #tpu.memory_space<vmem>>) attributes {dimension_semantics = [#tpu.dimension_semantics<parallel>, #tpu.dimension_semantics<parallel>], iteration_bounds = array<i64: 1, 1>, scalar_prefetch = 0 : i64, scratch_operands = 0 : i64, tpu.core_type = #tpu.core_type<tc>, window_params = [{transform_indices = @transform_0, window_bounds = array<i64: 64, 128>}, {transform_indices = @transform_1, window_bounds = array<i64: 128, 128>}, {transform_indices = @transform_2, window_bounds = array<i64: 1, 128>}, {transform_indices = @transform_3, window_bounds = array<i64: 64, 128>}]} {
    %c0 = arith.constant 0 : index
    %c0_0 = arith.constant 0 : index
    %0 = vector.load %arg2[%c0, %c0_0] : memref<64x128xf32, #tpu.memory_space<vmem>>, vector<64x128xf32>
    %1 = arith.truncf %0 : vector<64x128xf32> to vector<64x128xbf16>
    %c0_1 = arith.constant 0 : index
    %c0_2 = arith.constant 0 : index
    %2 = vector.load %arg3[%c0_1, %c0_2] : memref<128x128xbf16, #tpu.memory_space<vmem>>, vector<128x128xbf16>
    %cst = arith.constant dense<0.000000e+00> : vector<64x128xf32>
    %3 = tpu.matmul %1, %2, %cst {dimension_numbers = #tpu.dot_dimension_numbers<[1], [0], [0], [1], [0, 0, 1, 1], [], []>} : vector<64x128xbf16>, vector<128x128xbf16>, vector<64x128xf32> -> vector<64x128xf32>
    %c0_3 = arith.constant 0 : index
    %c0_4 = arith.constant 0 : index
    %4 = vector.load %arg4[%c0_3, %c0_4] : memref<1x128xf32, #tpu.memory_space<vmem>>, vector<1x128xf32>
    %5 = vector.broadcast %4 : vector<1x128xf32> to vector<64x128xf32>
    %6 = arith.addf %3, %5 : vector<64x128xf32>
    %c0_5 = arith.constant 0 : index
    %c0_6 = arith.constant 0 : index
    %7 = vector.load %arg5[%c0_5, %c0_6] : memref<64x128xf32, #tpu.memory_space<vmem>>, vector<64x128xf32>
    tpu.vector_store %arg5[%c0_5, %c0_6], %6 {strides = array<i32>} : memref<64x128xf32, #tpu.memory_space<vmem>>, vector<64x128xf32>,
    return
  }
  func.func @transform_0(%arg0: i32, %arg1: i32) -> (i32, i32) {
    %c0_i32 = arith.constant 0 : i32
    %c0_i32_0 = arith.constant 0 : i32
    return %arg0, %c0_i32 : i32, i32
  }
  func.func @transform_1(%arg0: i32, %arg1: i32) -> (i32, i32) {
    %c0_i32 = arith.constant 0 : i32
    %c0_i32_0 = arith.constant 0 : i32
    return %c0_i32, %arg1 : i32, i32
  }
  func.func @transform_2(%arg0: i32, %arg1: i32) -> (i32, i32) {
    %c0_i32 = arith.constant 0 : i32
    %c0_i32_0 = arith.constant 0 : i32
    return %c0_i32, %arg1 : i32, i32
  }
  func.func @transform_3(%arg0: i32, %arg1: i32) -> (i32, i32) {
    %c0_i32 = arith.constant 0 : i32
    return %arg0, %arg1 : i32, i32
  }
}

</mosaic_0001>

<llo_original>
// kernel: _lambda_.9
$region0: #{_lambda_.9}
  #allocation0 [shape = 'u32[]', space=smem, size = 0x4, offset = 0x4, fixed_abs, tag = 'smem constant byte address 0x4 - core index']
  #allocation1 [shape = 'u32[144,128]{1,0:T(1,128)}', space=vmem, size = 0x12000, scoped, tag = 'internal scratch']
  %s0 = inlined_call_operand.vmem [shape: f32[64,128], index: 0, kind: input, shape index: {}]
  %s1 = inlined_call_operand.vmem [shape: bf16[128,384], index: 1, kind: input, shape index: {}]
  %s2 = inlined_call_operand.vmem [shape: f32[1,384], index: 2, kind: input, shape index: {}]
  %s3 = inlined_call_operand.vmem [shape: f32[64,384], index: 3, kind: output, shape index: {}]
  %s4 = sld [smem:[#allocation0]]
  $region22: #{_lambda_.9} parent=0
    _
  %s6 = ssub.s32 1, %s4
  %s7 = scalar_select 0, %s6, %s4
  // Predicated region
  $region2: #{_lambda_.9} parent=0 // pred_check
    _
  $region3: #{_lambda_.9} parent=0 // pred_check_branch
    %9 = sbr.rel (0) target = $region5
  $region4: #{_lambda_.9} parent=0 // pred_region
    _
  $region5: #{_lambda_.9} parent=0 // pred_fallthru
    _
  // Predicated region
  $region6: #{_lambda_.9} parent=0 // pred_check
    _
  $region7: #{_lambda_.9} parent=0 // pred_check_branch
    %11 = sbr.rel (0) target = $region9
  $region8: #{_lambda_.9} parent=0 // pred_region
    _
  $region9: #{_lambda_.9} parent=0 // pred_fallthru
    _
  // Predicated region
  $region10: #{_lambda_.9} parent=0 // pred_check
    _
  $region11: #{_lambda_.9} parent=0 // pred_check_branch
    %13 = sbr.rel (0) target = $region13
  $region12: #{_lambda_.9} parent=0 // pred_region
    _
  $region13: #{_lambda_.9} parent=0 // pred_fallthru
    _
  %v15 = vld [vmem:[%s0] sm:$0xff]
  %v16 = vld [vmem:[%s0 + $0x8] sm:$0xff]
  %v17 = vld [vmem:[%s0 + $0x10] sm:$0xff]
  %v18 = vld [vmem:[%s0 + $0x18] sm:$0xff]
  %v19 = vld [vmem:[%s0 + $0x20] sm:$0xff]
  %v20 = vld [vmem:[%s0 + $0x28] sm:$0xff]
  %v21 = vld [vmem:[%s0 + $0x30] sm:$0xff]
  %v22 = vld [vmem:[%s0 + $0x38] sm:$0xff]
  %v23 = vpack.c.bf16 %v16, %v15
  %v24 = vpack.c.bf16 %v18, %v17
  %v25 = vpack.c.bf16 %v20, %v19
  %v26 = vpack.c.bf16 %v22, %v21
  %v27 = vld [vmem:[%s1] sm:$0xff]
  %v28 = vld [vmem:[%s1 + $0x8] sm:$0xf]
  %v29 = vld [vmem:[%s1 + $0xc] sm:$0xff]
  %v30 = vld [vmem:[%s1 + $0x14] sm:$0xf]
  %v31 = vld [vmem:[%s1 + $0x18] sm:$0xff]
  %v32 = vld [vmem:[%s1 + $0x20] sm:$0xf]
  %v33 = vld [vmem:[%s1 + $0x24] sm:$0xff]
  %v34 = vld [vmem:[%s1 + $0x2c] sm:$0xf]
  %v35 = vld [vmem:[%s1 + $0x30] sm:$0xff]
  %v36 = vld [vmem:[%s1 + $0x38] sm:$0xf]
  %v37 = vld [vmem:[%s1 + $0x3c] sm:$0xff]
  %v38 = vld [vmem:[%s1 + $0x44] sm:$0xf]
  %v39 = vld [vmem:[%s1 + $0x48] sm:$0xff]
  %v40 = vld [vmem:[%s1 + $0x50] sm:$0xf]
  %v41 = vld [vmem:[%s1 + $0x54] sm:$0xff]
  %v42 = vld [vmem:[%s1 + $0x5c] sm:$0xf]
  %v43 = vld [vmem:[%s1 + $0x60] sm:$0xff]
  %v44 = vld [vmem:[%s1 + $0x68] sm:$0xf]
  %v45 = vld [vmem:[%s1 + $0x6c] sm:$0xff]
  %v46 = vld [vmem:[%s1 + $0x74] sm:$0xf]
  %v47 = vld [vmem:[%s1 + $0x78] sm:$0xff]
  %v48 = vld [vmem:[%s1 + $0x80] sm:$0xf]
  %v49 = vld [vmem:[%s1 + $0x84] sm:$0xff]
  %v50 = vld [vmem:[%s1 + $0x8c] sm:$0xf]
  %v51 = vld [vmem:[%s1 + $0x90] sm:$0xff]
  %v52 = vld [vmem:[%s1 + $0x98] sm:$0xf]
  %v53 = vld [vmem:[%s1 + $0x9c] sm:$0xff]
  %v54 = vld [vmem:[%s1 + $0xa4] sm:$0xf]
  %v55 = vld [vmem:[%s1 + $0xa8] sm:$0xff]
  %v56 = vld [vmem:[%s1 + $0xb0] sm:$0xf]
  %v57 = vld [vmem:[%s1 + $0xb4] sm:$0xff]
  %v58 = vld [vmem:[%s1 + $0xbc] sm:$0xf]
  %v59 = vld [vmem:[%s2] sm:$0x7]
  %v61 = vlaneseq
  %v62 = vshrl.u32 %v61, 7
  %v63 = vsub.s32 0, %v62
  %v64 = vrot.slane %v59, %v63
  %v65 = vlaneseq
  %v66 = vshrl.u32 %v65, 7
  %v67 = vsub.s32 1, %v66
  %v68 = vrot.slane %v59, %v67
  %v69 = vlaneseq
  %v70 = vshrl.u32 %v69, 7
  %v71 = vsub.s32 2, %v70
  %v72 = vrot.slane %v59, %v71
  %v108 = vunpack.c.l.b16 %v27
  %v109 = vunpack.c.h.b16 %v27
  %v110 = vunpack.c.l.b16 %v28
  %v111 = vunpack.c.l.b16 %v29
  %v112 = vunpack.c.h.b16 %v29
  %v113 = vunpack.c.l.b16 %v30
  %v114 = vunpack.c.l.b16 %v31
  %v115 = vunpack.c.h.b16 %v31
  %v116 = vunpack.c.l.b16 %v32
  %v117 = vunpack.c.l.b16 %v33
  %v118 = vunpack.c.h.b16 %v33
  %v119 = vunpack.c.l.b16 %v34
  %v120 = vunpack.c.l.b16 %v35
  %v121 = vunpack.c.h.b16 %v35
  %v122 = vunpack.c.l.b16 %v36
  %v123 = vunpack.c.l.b16 %v37
  %v124 = vunpack.c.h.b16 %v37
  %v125 = vunpack.c.l.b16 %v38
  %v126 = vunpack.c.l.b16 %v39
  %v127 = vunpack.c.h.b16 %v39
  %v128 = vunpack.c.l.b16 %v40
  %v129 = vunpack.c.l.b16 %v41
  %v130 = vunpack.c.h.b16 %v41
  %v131 = vunpack.c.l.b16 %v42
  %v132 = vunpack.c.l.b16 %v43
  %v133 = vunpack.c.h.b16 %v43
  %v134 = vunpack.c.l.b16 %v44
  %v135 = vunpack.c.l.b16 %v45
  %v136 = vunpack.c.h.b16 %v45
  %v137 = vunpack.c.l.b16 %v46
  %v138 = vunpack.c.l.b16 %v47
  %v139 = vunpack.c.h.b16 %v47
  %v140 = vunpack.c.l.b16 %v48
  %v141 = vunpack.c.l.b16 %v49
  %v142 = vunpack.c.h.b16 %v49
  %v143 = vunpack.c.l.b16 %v50
  %v144 = vunpack.c.l.b16 %v51
  %v145 = vunpack.c.h.b16 %v51
  %v146 = vunpack.c.l.b16 %v52
  %v147 = vunpack.c.l.b16 %v53
  %v148 = vunpack.c.h.b16 %v53
  %v149 = vunpack.c.l.b16 %v54
  %v150 = vunpack.c.l.b16 %v55
  %v151 = vunpack.c.h.b16 %v55
  %v152 = vunpack.c.l.b16 %v56
  %v153 = vunpack.c.l.b16 %v57
  %v154 = vunpack.c.h.b16 %v57
  %v155 = vunpack.c.l.b16 %v58
  %v156 = vpack.c.b16 %v111, %v108
  %v157 = vpack.c.b16 %v112, %v109
  %v158 = vpack.c.b16 %v113, %v110
  %v159 = vpack.c.b16 %v117, %v114
  %v160 = vpack.c.b16 %v118, %v115
  %v161 = vpack.c.b16 %v119, %v116
  %v162 = vpack.c.b16 %v123, %v120
  %v163 = vpack.c.b16 %v124, %v121
  %v164 = vpack.c.b16 %v125, %v122
  %v165 = vpack.c.b16 %v129, %v126
  %v166 = vpack.c.b16 %v130, %v127
  %v167 = vpack.c.b16 %v131, %v128
  %v168 = vpack.c.b16 %v135, %v132
  %v169 = vpack.c.b16 %v136, %v133
  %v170 = vpack.c.b16 %v137, %v134
  %v171 = vpack.c.b16 %v141, %v138
  %v172 = vpack.c.b16 %v142, %v139
  %v173 = vpack.c.b16 %v143, %v140
  %v174 = vpack.c.b16 %v147, %v144
  %v175 = vpack.c.b16 %v148, %v145
  %v176 = vpack.c.b16 %v149, %v146
  %v177 = vpack.c.b16 %v153, %v150
  %v178 = vpack.c.b16 %v154, %v151
  %v179 = vpack.c.b16 %v155, %v152
  %204 = vmatprep.subr.bf16.mxu0 %v157
  %205 = vmatpush1.bf16.msra.mxu0 %v156
  %206 = vmatprep.subr.bf16.mxu0 %v160
  %207 = vmatpush1.bf16.msra.mxu0 %v159
  %208 = vmatprep.subr.bf16.mxu0 %v163
  %209 = vmatpush1.bf16.msra.mxu0 %v162
  %210 = vmatprep.subr.bf16.mxu0 %v166
  %211 = vmatpush1.bf16.msra.mxu0 %v165
  %212 = vmatprep.subr.bf16.mxu0 %v169
  %213 = vmatpush1.bf16.msra.mxu0 %v168
  %214 = vmatprep.subr.bf16.mxu0 %v172
  %215 = vmatpush1.bf16.msra.mxu0 %v171
  %216 = vmatprep.subr.bf16.mxu0 %v175
  %217 = vmatpush1.bf16.msra.mxu0 %v174
  %218 = vmatprep.subr.bf16.mxu0 %v178
  %219 = vmatpush1.bf16.msra.mxu0 %v177
  %220 = vmatprep.subr.bf16.mxu0 0
  %221 = vmatpush1.bf16.msra.mxu0 0
  %222 = vmatprep.subr.bf16.mxu0 0
  %223 = vmatpush1.bf16.msra.mxu0 0
  %224 = vmatprep.subr.bf16.mxu0 0
  %225 = vmatpush1.bf16.msra.mxu0 0
  %226 = vmatprep.subr.bf16.mxu0 0
  %227 = vmatpush1.bf16.msra.mxu0 0
  %228 = vmatprep.subr.bf16.mxu0 0
  %229 = vmatpush1.bf16.msra.mxu0 0
  %230 = vmatprep.subr.bf16.mxu0 0
  %231 = vmatpush1.bf16.msra.mxu0 0
  %232 = vmatprep.subr.bf16.mxu0 0
  %233 = vmatpush1.bf16.msra.mxu0 0
  %234 = vmatprep.subr.bf16.mxu0 0
  %235 = vmatpush1.bf16.msra.mxu0 0
  %236 = vmatprep.mubr.bf16.mxu0 0
  %237 = vmatmul.mubr.bf16.gmra.mrb[0].mxu0 %v23
  %v238 = vpop.f32.mrb[0].mxu0
  %v239 = vadd.f32 %v64, %v238
  %v240 = vpop.f32.mrb[0].mxu0
  %v241 = vadd.f32 %v68, %v240
  %v242 = vpop.f32.mrb[0].mxu0
  %v243 = vadd.f32 %v64, %v242
  %v244 = vpop.f32.mrb[0].mxu0
  %v245 = vadd.f32 %v68, %v244
  %246 = vmatprep.mubr.bf16.mxu0 0
  %247 = vmatmul.mubr.bf16.gmra.mrb[0].mxu0 %v24
  %v248 = vpop.f32.mrb[0].mxu0
  %v249 = vadd.f32 %v64, %v248
  %v250 = vpop.f32.mrb[0].mxu0
  %v251 = vadd.f32 %v68, %v250
  %v252 = vpop.f32.mrb[0].mxu0
  %v253 = vadd.f32 %v64, %v252
  %v254 = vpop.f32.mrb[0].mxu0
  %v255 = vadd.f32 %v68, %v254
  %256 = vmatprep.mubr.bf16.mxu0 0
  %257 = vmatmul.mubr.bf16.gmra.mrb[0].mxu0 %v25
  %v258 = vpop.f32.mrb[0].mxu0
  %v259 = vadd.f32 %v64, %v258
  %v260 = vpop.f32.mrb[0].mxu0
  %v261 = vadd.f32 %v68, %v260
  %v262 = vpop.f32.mrb[0].mxu0
  %v263 = vadd.f32 %v64, %v262
  %v264 = vpop.f32.mrb[0].mxu0
  %v265 = vadd.f32 %v68, %v264
  %266 = vmatprep.mubr.bf16.mxu0 0
  %267 = vmatmul.mubr.bf16.gmra.mrb[0].mxu0 %v26
  %v268 = vpop.f32.mrb[0].mxu0
  %v269 = vadd.f32 %v64, %v268
  %v270 = vpop.f32.mrb[0].mxu0
  %v271 = vadd.f32 %v68, %v270
  %v272 = vpop.f32.mrb[0].mxu0
  %v273 = vadd.f32 %v64, %v272
  %v274 = vpop.f32.mrb[0].mxu0
  %v275 = vadd.f32 %v68, %v274
  %276 = vdwg.mxu0
  %277 = vmatprep.subr.bf16.mxu0 0
  %278 = vmatpush1.bf16.msra.mxu0 %v158
  %279 = vmatprep.subr.bf16.mxu0 0
  %280 = vmatpush1.bf16.msra.mxu0 %v161
  %281 = vmatprep.subr.bf16.mxu0 0
  %282 = vmatpush1.bf16.msra.mxu0 %v164
  %283 = vmatprep.subr.bf16.mxu0 0
  %284 = vmatpush1.bf16.msra.mxu0 %v167
  %285 = vmatprep.subr.bf16.mxu0 0
  %286 = vmatpush1.bf16.msra.mxu0 %v170
  %287 = vmatprep.subr.bf16.mxu0 0
  %288 = vmatpush1.bf16.msra.mxu0 %v173
  %289 = vmatprep.subr.bf16.mxu0 0
  %290 = vmatpush1.bf16.msra.mxu0 %v176
  %291 = vmatprep.subr.bf16.mxu0 0
  %292 = vmatpush1.bf16.msra.mxu0 %v179
  %293 = vmatprep.subr.bf16.mxu0 0
  %294 = vmatpush1.bf16.msra.mxu0 0
  %295 = vmatprep.subr.bf16.mxu0 0
  %296 = vmatpush1.bf16.msra.mxu0 0
  %297 = vmatprep.subr.bf16.mxu0 0
  %298 = vmatpush1.bf16.msra.mxu0 0
  %299 = vmatprep.subr.bf16.mxu0 0
  %300 = vmatpush1.bf16.msra.mxu0 0
  %301 = vmatprep.subr.bf16.mxu0 0
  %302 = vmatpush1.bf16.msra.mxu0 0
  %303 = vmatprep.subr.bf16.mxu0 0
  %304 = vmatpush1.bf16.msra.mxu0 0
  %305 = vmatprep.subr.bf16.mxu0 0
  %306 = vmatpush1.bf16.msra.mxu0 0
  %307 = vmatprep.subr.bf16.mxu0 0
  %308 = vmatpush1.bf16.msra.mxu0 0
  %309 = vmatprep.mubr.bf16.mxu0 0
  %310 = vmatmul.mubr.bf16.gmra.mrb[0].mxu0 %v23
  %v311 = vpop.f32.mrb[0].mxu0
  %v312 = vadd.f32 %v72, %v311
  %v313 = vpop.f32.mrb[0].mxu0
  %v314 = vpop.f32.mrb[0].mxu0
  %v315 = vadd.f32 %v72, %v314
  %v316 = vpop.f32.mrb[0].mxu0
  %317 = vmatprep.mubr.bf16.mxu0 0
  %318 = vmatmul.mubr.bf16.gmra.mrb[0].mxu0 %v24
  %v319 = vpop.f32.mrb[0].mxu0
  %v320 = vadd.f32 %v72, %v319
  %v321 = vpop.f32.mrb[0].mxu0
  %v322 = vpop.f32.mrb[0].mxu0
  %v323 = vadd.f32 %v72, %v322
  %v324 = vpop.f32.mrb[0].mxu0
  %325 = vmatprep.mubr.bf16.mxu0 0
  %326 = vmatmul.mubr.bf16.gmra.mrb[0].mxu0 %v25
  %v327 = vpop.f32.mrb[0].mxu0
  %v328 = vadd.f32 %v72, %v327
  %v329 = vpop.f32.mrb[0].mxu0
  %v330 = vpop.f32.mrb[0].mxu0
  %v331 = vadd.f32 %v72, %v330
  %v332 = vpop.f32.mrb[0].mxu0
  %333 = vmatprep.mubr.bf16.mxu0 0
  %334 = vmatmul.mubr.bf16.gmra.mrb[0].mxu0 %v26
  %v335 = vpop.f32.mrb[0].mxu0
  %v336 = vadd.f32 %v72, %v335
  %v337 = vpop.f32.mrb[0].mxu0
  %v338 = vpop.f32.mrb[0].mxu0
  %v339 = vadd.f32 %v72, %v338
  %v340 = vpop.f32.mrb[0].mxu0
  %341 = vdwg.mxu0
  %342 = vst [vmem:[%s3] sm:$0xff] %v239
  %343 = vst [vmem:[%s3 + $0x8] sm:$0xff] %v241
  %344 = vst [vmem:[%s3 + $0x10] sm:$0xff] %v312
  %345 = vst [vmem:[%s3 + $0x18] sm:$0xff] %v243
  %346 = vst [vmem:[%s3 + $0x20] sm:$0xff] %v245
  %347 = vst [vmem:[%s3 + $0x28] sm:$0xff] %v315
  %348 = vst [vmem:[%s3 + $0x30] sm:$0xff] %v249
  %349 = vst [vmem:[%s3 + $0x38] sm:$0xff] %v251
  %350 = vst [vmem:[%s3 + $0x40] sm:$0xff] %v320
  %351 = vst [vmem:[%s3 + $0x48] sm:$0xff] %v253
  %352 = vst [vmem:[%s3 + $0x50] sm:$0xff] %v255
  %353 = vst [vmem:[%s3 + $0x58] sm:$0xff] %v323
  %354 = vst [vmem:[%s3 + $0x60] sm:$0xff] %v259
  %355 = vst [vmem:[%s3 + $0x68] sm:$0xff] %v261
  %356 = vst [vmem:[%s3 + $0x70] sm:$0xff] %v328
  %357 = vst [vmem:[%s3 + $0x78] sm:$0xff] %v263
  %358 = vst [vmem:[%s3 + $0x80] sm:$0xff] %v265
  %359 = vst [vmem:[%s3 + $0x88] sm:$0xff] %v331
  %360 = vst [vmem:[%s3 + $0x90] sm:$0xff] %v269
  %361 = vst [vmem:[%s3 + $0x98] sm:$0xff] %v271
  %362 = vst [vmem:[%s3 + $0xa0] sm:$0xff] %v336
  %363 = vst [vmem:[%s3 + $0xa8] sm:$0xff] %v273
  %364 = vst [vmem:[%s3 + $0xb0] sm:$0xff] %v275
  %365 = vst [vmem:[%s3 + $0xb8] sm:$0xff] %v339
  // Predicated region
  $region14: #{_lambda_.9} parent=0 // pred_check
    _
  $region15: #{_lambda_.9} parent=0 // pred_check_branch
    %367 = sbr.rel (0) target = $region17
  $region16: #{_lambda_.9} parent=0 // pred_region
    _
  $region17: #{_lambda_.9} parent=0 // pred_fallthru
    _
  // Predicated region
  $region18: #{_lambda_.9} parent=0 // pred_check
    _
  $region19: #{_lambda_.9} parent=0 // pred_check_branch
    %369 = sbr.rel (0) target = $region21
  $region20: #{_lambda_.9} parent=0 // pred_region
    _
  $region21: #{_lambda_.9} parent=0 // pred_fallthru
    _

// kernel: _lambda_.17
$region0: #{_lambda_.17}
  #allocation0 [shape = 'u32[]', space=smem, size = 0x4, offset = 0x4, fixed_abs, tag = 'smem constant byte address 0x4 - core index']
  #allocation1 [shape = 'u32[144,128]{1,0:T(1,128)}', space=vmem, size = 0x12000, scoped, tag = 'internal scratch']
  %s0 = inlined_call_operand.vmem [shape: f32[64,128], index: 0, kind: input, shape index: {}]
  %s1 = inlined_call_operand.vmem [shape: bf16[128,128], index: 1, kind: input, shape index: {}]
  %s2 = inlined_call_operand.vmem [shape: f32[1,128], index: 2, kind: input, shape index: {}]
  %s3 = inlined_call_operand.vmem [shape: f32[64,128], index: 3, kind: output, shape index: {}]
  %s4 = sld [smem:[#allocation0]]
  $region22: #{_lambda_.17} parent=0
    _
  %s6 = ssub.s32 1, %s4
  %s7 = scalar_select 0, %s6, %s4
  // Predicated region
  $region2: #{_lambda_.17} parent=0 // pred_check
    _
  $region3: #{_lambda_.17} parent=0 // pred_check_branch
    %9 = sbr.rel (0) target = $region5
  $region4: #{_lambda_.17} parent=0 // pred_region
    _
  $region5: #{_lambda_.17} parent=0 // pred_fallthru
    _
  // Predicated region
  $region6: #{_lambda_.17} parent=0 // pred_check
    _
  $region7: #{_lambda_.17} parent=0 // pred_check_branch
    %11 = sbr.rel (0) target = $region9
  $region8: #{_lambda_.17} parent=0 // pred_region
    _
  $region9: #{_lambda_.17} parent=0 // pred_fallthru
    _
  // Predicated region
  $region10: #{_lambda_.17} parent=0 // pred_check
    _
  $region11: #{_lambda_.17} parent=0 // pred_check_branch
    %13 = sbr.rel (0) target = $region13
  $region12: #{_lambda_.17} parent=0 // pred_region
    _
  $region13: #{_lambda_.17} parent=0 // pred_fallthru
    _
  %v15 = vld [vmem:[%s0] sm:$0xff]
  %v16 = vld [vmem:[%s0 + $0x8] sm:$0xff]
  %v17 = vld [vmem:[%s0 + $0x10] sm:$0xff]
  %v18 = vld [vmem:[%s0 + $0x18] sm:$0xff]
  %v19 = vld [vmem:[%s0 + $0x20] sm:$0xff]
  %v20 = vld [vmem:[%s0 + $0x28] sm:$0xff]
  %v21 = vld [vmem:[%s0 + $0x30] sm:$0xff]
  %v22 = vld [vmem:[%s0 + $0x38] sm:$0xff]
  %v23 = vpack.c.bf16 %v16, %v15
  %v24 = vpack.c.bf16 %v18, %v17
  %v25 = vpack.c.bf16 %v20, %v19
  %v26 = vpack.c.bf16 %v22, %v21
  %v27 = vld [vmem:[%s1] sm:$0xf]
  %v28 = vld [vmem:[%s1 + $0x4] sm:$0xf]
  %v29 = vld [vmem:[%s1 + $0x8] sm:$0xf]
  %v30 = vld [vmem:[%s1 + $0xc] sm:$0xf]
  %v31 = vld [vmem:[%s1 + $0x10] sm:$0xf]
  %v32 = vld [vmem:[%s1 + $0x14] sm:$0xf]
  %v33 = vld [vmem:[%s1 + $0x18] sm:$0xf]
  %v34 = vld [vmem:[%s1 + $0x1c] sm:$0xf]
  %v35 = vld [vmem:[%s1 + $0x20] sm:$0xf]
  %v36 = vld [vmem:[%s1 + $0x24] sm:$0xf]
  %v37 = vld [vmem:[%s1 + $0x28] sm:$0xf]
  %v38 = vld [vmem:[%s1 + $0x2c] sm:$0xf]
  %v39 = vld [vmem:[%s1 + $0x30] sm:$0xf]
  %v40 = vld [vmem:[%s1 + $0x34] sm:$0xf]
  %v41 = vld [vmem:[%s1 + $0x38] sm:$0xf]
  %v42 = vld [vmem:[%s1 + $0x3c] sm:$0xf]
  %v43 = vld [vmem:[%s2] sm:$0x1]
  %v45 = vlaneseq
  %v46 = vshrl.u32 %v45, 7
  %v47 = vsub.s32 0, %v46
  %v48 = vrot.slane %v43, %v47
  %v66 = vunpack.c.l.b16 %v27
  %v67 = vunpack.c.l.b16 %v28
  %v68 = vunpack.c.l.b16 %v29
  %v69 = vunpack.c.l.b16 %v30
  %v70 = vunpack.c.l.b16 %v31
  %v71 = vunpack.c.l.b16 %v32
  %v72 = vunpack.c.l.b16 %v33
  %v73 = vunpack.c.l.b16 %v34
  %v74 = vunpack.c.l.b16 %v35
  %v75 = vunpack.c.l.b16 %v36
  %v76 = vunpack.c.l.b16 %v37
  %v77 = vunpack.c.l.b16 %v38
  %v78 = vunpack.c.l.b16 %v39
  %v79 = vunpack.c.l.b16 %v40
  %v80 = vunpack.c.l.b16 %v41
  %v81 = vunpack.c.l.b16 %v42
  %v82 = vpack.c.b16 %v67, %v66
  %v83 = vpack.c.b16 %v69, %v68
  %v84 = vpack.c.b16 %v71, %v70
  %v85 = vpack.c.b16 %v73, %v72
  %v86 = vpack.c.b16 %v75, %v74
  %v87 = vpack.c.b16 %v77, %v76
  %v88 = vpack.c.b16 %v79, %v78
  %v89 = vpack.c.b16 %v81, %v80
  %98 = vmatprep.subr.bf16.mxu0 0
  %99 = vmatpush1.bf16.msra.mxu0 %v82
  %100 = vmatprep.subr.bf16.mxu0 0
  %101 = vmatpush1.bf16.msra.mxu0 %v83
  %102 = vmatprep.subr.bf16.mxu0 0
  %103 = vmatpush1.bf16.msra.mxu0 %v84
  %104 = vmatprep.subr.bf16.mxu0 0
  %105 = vmatpush1.bf16.msra.mxu0 %v85
  %106 = vmatprep.subr.bf16.mxu0 0
  %107 = vmatpush1.bf16.msra.mxu0 %v86
  %108 = vmatprep.subr.bf16.mxu0 0
  %109 = vmatpush1.bf16.msra.mxu0 %v87
  %110 = vmatprep.subr.bf16.mxu0 0
  %111 = vmatpush1.bf16.msra.mxu0 %v88
  %112 = vmatprep.subr.bf16.mxu0 0
  %113 = vmatpush1.bf16.msra.mxu0 %v89
  %114 = vmatprep.subr.bf16.mxu0 0
  %115 = vmatpush1.bf16.msra.mxu0 0
  %116 = vmatprep.subr.bf16.mxu0 0
  %117 = vmatpush1.bf16.msra.mxu0 0
  %118 = vmatprep.subr.bf16.mxu0 0
  %119 = vmatpush1.bf16.msra.mxu0 0
  %120 = vmatprep.subr.bf16.mxu0 0
  %121 = vmatpush1.bf16.msra.mxu0 0
  %122 = vmatprep.subr.bf16.mxu0 0
  %123 = vmatpush1.bf16.msra.mxu0 0
  %124 = vmatprep.subr.bf16.mxu0 0
  %125 = vmatpush1.bf16.msra.mxu0 0
  %126 = vmatprep.subr.bf16.mxu0 0
  %127 = vmatpush1.bf16.msra.mxu0 0
  %128 = vmatprep.subr.bf16.mxu0 0
  %129 = vmatpush1.bf16.msra.mxu0 0
  %130 = vmatprep.mubr.bf16.mxu0 0
  %131 = vmatmul.mubr.bf16.gmra.mrb[0].mxu0 %v23
  %v132 = vpop.f32.mrb[0].mxu0
  %v133 = vadd.f32 %v48, %v132
  %v134 = vpop.f32.mrb[0].mxu0
  %v135 = vpop.f32.mrb[0].mxu0
  %v136 = vadd.f32 %v48, %v135
  %v137 = vpop.f32.mrb[0].mxu0
  %138 = vmatprep.mubr.bf16.mxu0 0
  %139 = vmatmul.mubr.bf16.gmra.mrb[0].mxu0 %v24
  %v140 = vpop.f32.mrb[0].mxu0
  %v141 = vadd.f32 %v48, %v140
  %v142 = vpop.f32.mrb[0].mxu0
  %v143 = vpop.f32.mrb[0].mxu0
  %v144 = vadd.f32 %v48, %v143
  %v145 = vpop.f32.mrb[0].mxu0
  %146 = vmatprep.mubr.bf16.mxu0 0
  %147 = vmatmul.mubr.bf16.gmra.mrb[0].mxu0 %v25
  %v148 = vpop.f32.mrb[0].mxu0
  %v149 = vadd.f32 %v48, %v148
  %v150 = vpop.f32.mrb[0].mxu0
  %v151 = vpop.f32.mrb[0].mxu0
  %v152 = vadd.f32 %v48, %v151
  %v153 = vpop.f32.mrb[0].mxu0
  %154 = vmatprep.mubr.bf16.mxu0 0
  %155 = vmatmul.mubr.bf16.gmra.mrb[0].mxu0 %v26
  %v156 = vpop.f32.mrb[0].mxu0
  %v157 = vadd.f32 %v48, %v156
  %v158 = vpop.f32.mrb[0].mxu0
  %v159 = vpop.f32.mrb[0].mxu0
  %v160 = vadd.f32 %v48, %v159
  %v161 = vpop.f32.mrb[0].mxu0
  %162 = vdwg.mxu0
  %163 = vst [vmem:[%s3] sm:$0xff] %v133
  %164 = vst [vmem:[%s3 + $0x8] sm:$0xff] %v136
  %165 = vst [vmem:[%s3 + $0x10] sm:$0xff] %v141
  %166 = vst [vmem:[%s3 + $0x18] sm:$0xff] %v144
  %167 = vst [vmem:[%s3 + $0x20] sm:$0xff] %v149
  %168 = vst [vmem:[%s3 + $0x28] sm:$0xff] %v152
  %169 = vst [vmem:[%s3 + $0x30] sm:$0xff] %v157
  %170 = vst [vmem:[%s3 + $0x38] sm:$0xff] %v160
  // Predicated region
  $region14: #{_lambda_.17} parent=0 // pred_check
    _
  $region15: #{_lambda_.17} parent=0 // pred_check_branch
    %172 = sbr.rel (0) target = $region17
  $region16: #{_lambda_.17} parent=0 // pred_region
    _
  $region17: #{_lambda_.17} parent=0 // pred_fallthru
    _
  // Predicated region
  $region18: #{_lambda_.17} parent=0 // pred_check
    _
  $region19: #{_lambda_.17} parent=0 // pred_check_branch
    %174 = sbr.rel (0) target = $region21
  $region20: #{_lambda_.17} parent=0 // pred_region
    _
  $region21: #{_lambda_.17} parent=0 // pred_fallthru
    _

// kernel: _lambda_.10
$region0: #{_lambda_.10}
  #allocation0 [shape = 'u32[]', space=smem, size = 0x4, offset = 0x4, fixed_abs, tag = 'smem constant byte address 0x4 - core index']
  #allocation1 [shape = 'u32[144,128]{1,0:T(1,128)}', space=vmem, size = 0x12000, scoped, tag = 'internal scratch']
  #allocation2 [shape = 'f32[8,128]{1,0:T(8,128)}', space=vmem, size = 0x1000, scoped, tag = 'scratch operand']
  %s0 = inlined_call_operand.vmem [shape: f32[8,8,384], index: 0, kind: input, shape index: {}]
  %s1 = inlined_call_operand.vmem [shape: f32[8,128], index: 1, kind: input, shape index: {}]
  %s2 = inlined_call_operand.vmem [shape: bf16[128,384], index: 2, kind: input, shape index: {}]
  %s3 = inlined_call_operand.vmem [shape: f32[1,384], index: 3, kind: input, shape index: {}]
  %s4 = inlined_call_operand.vmem [shape: f32[8,8,128], index: 4, kind: output, shape index: {}]
  %s5 = sld [smem:[#allocation0]]
  $region53: #{_lambda_.10} parent=0
    _
  %s7 = ssub.s32 1, %s5
  %s8 = scalar_select 0, %s7, %s5
  loop: start=0, step=1, limit=10
  $region2: #{_lambda_.10} parent=0 // loop_pre_header
    _
  $region3: #{_lambda_.10} parent=0 // loop_header
    %s10 = sphi 0, %s14
    %p11 = scmp.ge.s32.totalorder %s10, 10
    %s17 = sphi 0, %s29
    %s18 = sphi 0, %s25
    %s19 = sphi 0, %s17
    %s20 = sphi 0, %s18
    %s21 = sphi 0, %s19
    %s22 = sphi 0, %s20
    %s34 = sphi 0, %s36
    %s37 = sphi 0, %s34
    %s38 = sphi 0, %s37
    %s54 = sphi 0, %s38
    %s60 = sphi 0, %s62
    %s63 = sphi 0, %s60
    %s64 = sphi 0, %s63
    %s80 = sphi 0, %s64
    %s84 = sphi 0, %s84
    %s86 = sphi 0, %s84
    %s87 = sphi 0, %s86
    %s101 = sphi 0, %s87
    %s105 = sphi 0, %s105
    %s107 = sphi 0, %s105
    %s108 = sphi 0, %s107
    %s122 = sphi 0, %s108
    %s130 = sphi 0, %s132
    %s133 = sphi 0, %s130
    %s134 = sphi 0, %s133
    %s150 = sphi 0, %s134
  $region4: #{_lambda_.10} parent=0 // loop_header_branch
    %13 = sbr.rel (%p11) target = $region8
  $region5: #{_lambda_.10} parent=0 // loop_body
    %s15 = ssub.s32 %s10, 1
    %s16 = ssub.s32 %s10, 2
    %s23 = sadd.s32 1, %s18
    %p24 = scmp.ge.s32.totalorder %s23, 8
    %s25 = scalar_select %p24, 0, %s23
    %s26 = sadd.s32 1, %s17
    %s27 = scalar_select %p24, %s26, %s17
    %p28 = scmp.ge.s32.totalorder %s27, 1
    %s29 = scalar_select %p28, 0, %s27
    %s30 = ssub.s32 %s18, %s25
    %s31 = ssub.s32 %s17, %s29
    %s32 = sor.u32 %s30, %s31
    %p33 = scmp.eq.s32.totalorder %s32, 0
    %s35 = sadd.s32 %s34, 1
    %s36 = scalar_select %p33, %s34, %s35
    %p39 = pneg %p33
    %p40 = scmp.eq.s32.totalorder %s10, 7
    %p41 = por %p39, %p40
    %p42 = scmp.ne.s32.totalorder %s34, %s37
    %p43 = scmp.eq.s32.totalorder %s10, 0
    %p44 = por %p42, %p43
    %p45 = scmp.ne.s32.totalorder %s34, %s37
    %p46 = scmp.eq.s32.totalorder %s15, 7
    %p47 = por %p45, %p46
    %p48 = scmp.ne.s32.totalorder %s37, %s38
    %p49 = scmp.eq.s32.totalorder %s15, 0
    %p50 = por %p48, %p49
    %p51 = scmp.ne.s32.totalorder %s37, %s38
    %p52 = scmp.eq.s32.totalorder %s16, 7
    %p53 = por %p51, %p52
    %p55 = scmp.ne.s32.totalorder %s38, %s54
    %p56 = scmp.eq.s32.totalorder %s16, 0
    %p57 = por %p55, %p56
    %s58 = ssub.s32 %s17, %s29
    %p59 = scmp.eq.s32.totalorder %s58, 0
    %s61 = sadd.s32 %s60, 1
    %s62 = scalar_select %p59, %s60, %s61
    %p65 = pneg %p59
    %p66 = scmp.eq.s32.totalorder %s10, 7
    %p67 = por %p65, %p66
    %p68 = scmp.ne.s32.totalorder %s60, %s63
    %p69 = scmp.eq.s32.totalorder %s10, 0
    %p70 = por %p68, %p69
    %p71 = scmp.ne.s32.totalorder %s60, %s63
    %p72 = scmp.eq.s32.totalorder %s15, 7
    %p73 = por %p71, %p72
    %p74 = scmp.ne.s32.totalorder %s63, %s64
    %p75 = scmp.eq.s32.totalorder %s15, 0
    %p76 = por %p74, %p75
    %p77 = scmp.ne.s32.totalorder %s63, %s64
    %p78 = scmp.eq.s32.totalorder %s16, 7
    %p79 = por %p77, %p78
    %p81 = scmp.ne.s32.totalorder %s64, %s80
    %p82 = scmp.eq.s32.totalorder %s16, 0
    %p83 = por %p81, %p82
    %s85 = sadd.s32 %s84, 1
    %p88 = scmp.eq.s32.totalorder %s10, 7
    %p89 = scmp.ne.s32.totalorder %s84, %s86
    %p90 = scmp.eq.s32.totalorder %s10, 0
    %p91 = por %p89, %p90
    %p92 = scmp.ne.s32.totalorder %s84, %s86
    %p93 = scmp.eq.s32.totalorder %s15, 7
    %p94 = por %p92, %p93
    %p95 = scmp.ne.s32.totalorder %s86, %s87
    %p96 = scmp.eq.s32.totalorder %s15, 0
    %p97 = por %p95, %p96
    %p98 = scmp.ne.s32.totalorder %s86, %s87
    %p99 = scmp.eq.s32.totalorder %s16, 7
    %p100 = por %p98, %p99
    %p102 = scmp.ne.s32.totalorder %s87, %s101
    %p103 = scmp.eq.s32.totalorder %s16, 0
    %p104 = por %p102, %p103
    %s106 = sadd.s32 %s105, 1
    %p109 = scmp.eq.s32.totalorder %s10, 7
    %p110 = scmp.ne.s32.totalorder %s105, %s107
    %p111 = scmp.eq.s32.totalorder %s10, 0
    %p112 = por %p110, %p111
    %p113 = scmp.ne.s32.totalorder %s105, %s107
    %p114 = scmp.eq.s32.totalorder %s15, 7
    %p115 = por %p113, %p114
    %p116 = scmp.ne.s32.totalorder %s107, %s108
    %p117 = scmp.eq.s32.totalorder %s15, 0
    %p118 = por %p116, %p117
    %p119 = scmp.ne.s32.totalorder %s107, %s108
    %p120 = scmp.eq.s32.totalorder %s16, 7
    %p121 = por %p119, %p120
    %p123 = scmp.ne.s32.totalorder %s108, %s122
    %p124 = scmp.eq.s32.totalorder %s16, 0
    %p125 = por %p123, %p124
    %s126 = ssub.s32 %s18, %s25
    %s127 = ssub.s32 %s17, %s29
    %s128 = sor.u32 %s126, %s127
    %p129 = scmp.eq.s32.totalorder %s128, 0
    %s131 = sadd.s32 %s130, 1
    %s132 = scalar_select %p129, %s130, %s131
    %p135 = pneg %p129
    %p136 = scmp.eq.s32.totalorder %s10, 7
    %p137 = por %p135, %p136
    %p138 = scmp.ne.s32.totalorder %s130, %s133
    %p139 = scmp.eq.s32.totalorder %s10, 0
    %p140 = por %p138, %p139
    %p141 = scmp.ne.s32.totalorder %s130, %s133
    %p142 = scmp.eq.s32.totalorder %s15, 7
    %p143 = por %p141, %p142
    %p144 = scmp.ne.s32.totalorder %s133, %s134
    %p145 = scmp.eq.s32.totalorder %s15, 0
    %p146 = por %p144, %p145
    %p147 = scmp.ne.s32.totalorder %s133, %s134
    %p148 = scmp.eq.s32.totalorder %s16, 7
    %p149 = por %p147, %p148
    %p151 = scmp.ne.s32.totalorder %s134, %s150
    %p152 = scmp.eq.s32.totalorder %s16, 0
    %p153 = por %p151, %p152
    %p154 = scmp.le.s32.totalorder 1, %s10
    %p155 = scmp.lt.s32.totalorder %s10, 9
    %p156 = pnand %p154, %p155
    %p157 = pneg %p156
    // Predicated region
    $region9: #{_lambda_.10} parent=5 // pred_check
      _
    $region10: #{_lambda_.10} parent=5 // pred_check_branch
      %159 = sbr.rel (%p156) target = $region12
    $region11: #{_lambda_.10} parent=5 // pred_region
      %s160 = ssub.s32 %s10, 1
      // Predicated region
      $region13: #{_lambda_.10} parent=11 // pred_check
        %p161 = pneg %p76
      $region14: #{_lambda_.10} parent=11 // pred_check_branch
        %163 = sbr.rel (%p161) target = $region16
      $region15: #{_lambda_.10} parent=11 // pred_region
        %p164 = scmp.lt.s32.totalorder %s19, 0
        %s165 = scalar_select %p164, %s19, 0
        %s166 = smul.addr %s165, 8
        %s167 = scalar_lea.vmem %s1, %s166
      $region16: #{_lambda_.10} parent=11 // pred_fallthru
        _
      // Predicated region
      $region17: #{_lambda_.10} parent=11 // pred_check
        %p168 = pneg %p97
      $region18: #{_lambda_.10} parent=11 // pred_check_branch
        %170 = sbr.rel (%p168) target = $region20
      $region19: #{_lambda_.10} parent=11 // pred_region
        _
      $region20: #{_lambda_.10} parent=11 // pred_fallthru
        _
      // Predicated region
      $region21: #{_lambda_.10} parent=11 // pred_check
        %p171 = pneg %p118
      $region22: #{_lambda_.10} parent=11 // pred_check_branch
        %173 = sbr.rel (%p171) target = $region24
      $region23: #{_lambda_.10} parent=11 // pred_region
        _
      $region24: #{_lambda_.10} parent=11 // pred_fallthru
        _
    $region12: #{_lambda_.10} parent=5 // pred_fallthru
      _
    %p174 = scmp.lt.s32.totalorder %s10, 8
    // Predicated region
    $region25: #{_lambda_.10} parent=5 // pred_check
      %p175 = pneg %p174
    $region26: #{_lambda_.10} parent=5 // pred_check_branch
      %177 = sbr.rel (%p175) target = $region28
    $region27: #{_lambda_.10} parent=5 // pred_region
      // Predicated region
      $region29: #{_lambda_.10} parent=27 // pred_check
        %p178 = pneg %p44
      $region30: #{_lambda_.10} parent=27 // pred_check_branch
        %180 = sbr.rel (%p178) target = $region32
      $region31: #{_lambda_.10} parent=27 // pred_region
        %p181 = scmp.lt.s32.totalorder %s18, 7
        %s182 = scalar_select %p181, %s18, 7
        %p183 = scmp.lt.s32.totalorder %s17, 0
        %s184 = scalar_select %p183, %s17, 0
        %s185 = smul.addr %s184, 3
        %s186 = smul.addr %s182, 3
        %s187 = sadd.s32 %s185, %s186
        %s188 = smul.addr %s187, 8
        %s189 = scalar_lea.vmem %s0, %s188
      $region32: #{_lambda_.10} parent=27 // pred_fallthru
        _
    $region28: #{_lambda_.10} parent=5 // pred_fallthru
      _
    %p190 = scmp.le.s32.totalorder 1, %s10
    %p191 = scmp.lt.s32.totalorder %s10, 9
    %p192 = pnand %p190, %p191
    %p193 = pneg %p192
    // Predicated region
    $region33: #{_lambda_.10} parent=5 // pred_check
      _
    $region34: #{_lambda_.10} parent=5 // pred_check_branch
      %195 = sbr.rel (%p192) target = $region36
    $region35: #{_lambda_.10} parent=5 // pred_region
      %s196 = ssub.s32 %s10, 1
      %p197 = scmp.lt.s32.totalorder %s20, 7
      %s198 = scalar_select %p197, %s20, 7
      %p199 = scmp.lt.s32.totalorder %s19, 0
      %s200 = scalar_select %p199, %s19, 0
      %s201 = smul.addr %s200, 3
      %s202 = smul.addr %s198, 3
      %s203 = sadd.s32 %s201, %s202
      %s204 = smul.addr %s203, 8
      %s205 = scalar_lea.vmem %s0, %s204
      %p206 = pneg %p50
      %p207 = pneg %p47
      %p208 = scmp.lt.s32.totalorder %s19, 0
      %s209 = scalar_select %p208, %s19, 0
      %s210 = smul.addr %s209, 8
      %s211 = scalar_lea.vmem %s1, %s210
      %p212 = pneg %p76
      %p213 = pneg %p73
      %p214 = pneg %p97
      %p215 = pneg %p94
      %p216 = pneg %p118
      %p217 = pneg %p115
      %p218 = pneg %p146
      %p219 = pneg %p143
      %p220 = scmp.lt.s32.totalorder %s20, 7
      %s221 = scalar_select %p220, %s20, 7
      %p222 = scmp.lt.s32.totalorder %s19, 0
      %s223 = scalar_select %p222, %s19, 0
      %s224 = sadd.s32 %s223, %s221
      %s225 = smul.addr %s224, 8
      %s226 = scalar_lea.vmem %s4, %s225
      %p227 = scmp.lt.s32.totalorder %s20, 7
      %s228 = scalar_select %p227, %s20, 7
      %p229 = scmp.lt.s32.totalorder %s19, 0
      %s230 = scalar_select %p229, %s19, 0
      %s231 = smul.addr %s230, 3
      %s232 = smul.addr %s228, 3
      %s233 = sadd.s32 %s231, %s232
      %s234 = smul.addr %s233, 8
      %s235 = scalar_lea.vmem %s0, %s234
      %p236 = scmp.lt.s32.totalorder %s19, 0
      %s237 = scalar_select %p236, %s19, 0
      %s238 = smul.addr %s237, 8
      %s239 = scalar_lea.vmem %s1, %s238
      %p240 = scmp.lt.s32.totalorder %s20, 7
      %s241 = scalar_select %p240, %s20, 7
      %p242 = scmp.lt.s32.totalorder %s19, 0
      %s243 = scalar_select %p242, %s19, 0
      %s244 = sadd.s32 %s243, %s241
      %s245 = smul.addr %s244, 8
      %s246 = scalar_lea.vmem %s4, %s245
      %p248 = scmp.eq.s32.totalorder %s20, 0
      // Predicated region
      $region37: #{_lambda_.10} parent=35 // pred_check
        %p249 = pneg %p248
      $region38: #{_lambda_.10} parent=35 // pred_check_branch
        %251 = sbr.rel (%p249) target = $region40
      $region39: #{_lambda_.10} parent=35 // pred_region
        %v252 = vld [vmem:[%s239] sm:$0xff]
        %253 = vst [vmem:[#allocation2] sm:$0xff] %v252
      $region40: #{_lambda_.10} parent=35 // pred_fallthru
        _
      %v254 = vld [vmem:[#allocation2] sm:$0xff]
      %v255 = vpack.c.bf16 %v254, %v254
      %v256 = vld [vmem:[%s2] sm:$0xff]
      %v257 = vld [vmem:[%s2 + $0x8] sm:$0xf]
      %v258 = vld [vmem:[%s2 + $0xc] sm:$0xff]
      %v259 = vld [vmem:[%s2 + $0x14] sm:$0xf]
      %v260 = vld [vmem:[%s2 + $0x18] sm:$0xff]
      %v261 = vld [vmem:[%s2 + $0x20] sm:$0xf]
      %v262 = vld [vmem:[%s2 + $0x24] sm:$0xff]
      %v263 = vld [vmem:[%s2 + $0x2c] sm:$0xf]
      %v264 = vld [vmem:[%s2 + $0x30] sm:$0xff]
      %v265 = vld [vmem:[%s2 + $0x38] sm:$0xf]
      %v266 = vld [vmem:[%s2 + $0x3c] sm:$0xff]
      %v267 = vld [vmem:[%s2 + $0x44] sm:$0xf]
      %v268 = vld [vmem:[%s2 + $0x48] sm:$0xff]
      %v269 = vld [vmem:[%s2 + $0x50] sm:$0xf]
      %v270 = vld [vmem:[%s2 + $0x54] sm:$0xff]
      %v271 = vld [vmem:[%s2 + $0x5c] sm:$0xf]
      %v272 = vld [vmem:[%s2 + $0x60] sm:$0xff]
      %v273 = vld [vmem:[%s2 + $0x68] sm:$0xf]
      %v274 = vld [vmem:[%s2 + $0x6c] sm:$0xff]
      %v275 = vld [vmem:[%s2 + $0x74] sm:$0xf]
      %v276 = vld [vmem:[%s2 + $0x78] sm:$0xff]
      %v277 = vld [vmem:[%s2 + $0x80] sm:$0xf]
      %v278 = vld [vmem:[%s2 + $0x84] sm:$0xff]
      %v279 = vld [vmem:[%s2 + $0x8c] sm:$0xf]
      %v280 = vld [vmem:[%s2 + $0x90] sm:$0xff]
      %v281 = vld [vmem:[%s2 + $0x98] sm:$0xf]
      %v282 = vld [vmem:[%s2 + $0x9c] sm:$0xff]
      %v283 = vld [vmem:[%s2 + $0xa4] sm:$0xf]
      %v284 = vld [vmem:[%s2 + $0xa8] sm:$0xff]
      %v285 = vld [vmem:[%s2 + $0xb0] sm:$0xf]
      %v286 = vld [vmem:[%s2 + $0xb4] sm:$0xff]
      %v287 = vld [vmem:[%s2 + $0xbc] sm:$0xf]
      %v288 = vld [vmem:[%s3] sm:$0x7]
      %v290 = vlaneseq
      %v291 = vshrl.u32 %v290, 7
      %v292 = vsub.s32 0, %v291
      %v293 = vrot.slane %v288, %v292
      %v294 = vlaneseq
      %v295 = vshrl.u32 %v294, 7
      %v296 = vsub.s32 1, %v295
      %v297 = vrot.slane %v288, %v296
      %v298 = vlaneseq
      %v299 = vshrl.u32 %v298, 7
      %v300 = vsub.s32 2, %v299
      %v301 = vrot.slane %v288, %v300
      %v337 = vunpack.c.l.b16 %v256
      %v338 = vunpack.c.h.b16 %v256
      %v339 = vunpack.c.l.b16 %v257
      %v340 = vunpack.c.l.b16 %v258
      %v341 = vunpack.c.h.b16 %v258
      %v342 = vunpack.c.l.b16 %v259
      %v343 = vunpack.c.l.b16 %v260
      %v344 = vunpack.c.h.b16 %v260
      %v345 = vunpack.c.l.b16 %v261
      %v346 = vunpack.c.l.b16 %v262
      %v347 = vunpack.c.h.b16 %v262
      %v348 = vunpack.c.l.b16 %v263
      %v349 = vunpack.c.l.b16 %v264
      %v350 = vunpack.c.h.b16 %v264
      %v351 = vunpack.c.l.b16 %v265
      %v352 = vunpack.c.l.b16 %v266
      %v353 = vunpack.c.h.b16 %v266
      %v354 = vunpack.c.l.b16 %v267
      %v355 = vunpack.c.l.b16 %v268
      %v356 = vunpack.c.h.b16 %v268
      %v357 = vunpack.c.l.b16 %v269
      %v358 = vunpack.c.l.b16 %v270
      %v359 = vunpack.c.h.b16 %v270
      %v360 = vunpack.c.l.b16 %v271
      %v361 = vunpack.c.l.b16 %v272
      %v362 = vunpack.c.h.b16 %v272
      %v363 = vunpack.c.l.b16 %v273
      %v364 = vunpack.c.l.b16 %v274
      %v365 = vunpack.c.h.b16 %v274
      %v366 = vunpack.c.l.b16 %v275
      %v367 = vunpack.c.l.b16 %v276
      %v368 = vunpack.c.h.b16 %v276
      %v369 = vunpack.c.l.b16 %v277
      %v370 = vunpack.c.l.b16 %v278
      %v371 = vunpack.c.h.b16 %v278
      %v372 = vunpack.c.l.b16 %v279
      %v373 = vunpack.c.l.b16 %v280
      %v374 = vunpack.c.h.b16 %v280
      %v375 = vunpack.c.l.b16 %v281
      %v376 = vunpack.c.l.b16 %v282
      %v377 = vunpack.c.h.b16 %v282
      %v378 = vunpack.c.l.b16 %v283
      %v379 = vunpack.c.l.b16 %v284
      %v380 = vunpack.c.h.b16 %v284
      %v381 = vunpack.c.l.b16 %v285
      %v382 = vunpack.c.l.b16 %v286
      %v383 = vunpack.c.h.b16 %v286
      %v384 = vunpack.c.l.b16 %v287
      %v385 = vpack.c.b16 %v340, %v337
      %v386 = vpack.c.b16 %v341, %v338
      %v387 = vpack.c.b16 %v342, %v339
      %v388 = vpack.c.b16 %v346, %v343
      %v389 = vpack.c.b16 %v347, %v344
      %v390 = vpack.c.b16 %v348, %v345
      %v391 = vpack.c.b16 %v352, %v349
      %v392 = vpack.c.b16 %v353, %v350
      %v393 = vpack.c.b16 %v354, %v351
      %v394 = vpack.c.b16 %v358, %v355
      %v395 = vpack.c.b16 %v359, %v356
      %v396 = vpack.c.b16 %v360, %v357
      %v397 = vpack.c.b16 %v364, %v361
      %v398 = vpack.c.b16 %v365, %v362
      %v399 = vpack.c.b16 %v366, %v363
      %v400 = vpack.c.b16 %v370, %v367
      %v401 = vpack.c.b16 %v371, %v368
      %v402 = vpack.c.b16 %v372, %v369
      %v403 = vpack.c.b16 %v376, %v373
      %v404 = vpack.c.b16 %v377, %v374
      %v405 = vpack.c.b16 %v378, %v375
      %v406 = vpack.c.b16 %v382, %v379
      %v407 = vpack.c.b16 %v383, %v380
      %v408 = vpack.c.b16 %v384, %v381
      %433 = vmatprep.subr.bf16.mxu0 %v386
      %434 = vmatpush1.bf16.msra.mxu0 %v385
      %435 = vmatprep.subr.bf16.mxu0 %v389
      %436 = vmatpush1.bf16.msra.mxu0 %v388
      %437 = vmatprep.subr.bf16.mxu0 %v392
      %438 = vmatpush1.bf16.msra.mxu0 %v391
      %439 = vmatprep.subr.bf16.mxu0 %v395
      %440 = vmatpush1.bf16.msra.mxu0 %v394
      %441 = vmatprep.subr.bf16.mxu0 %v398
      %442 = vmatpush1.bf16.msra.mxu0 %v397
      %443 = vmatprep.subr.bf16.mxu0 %v401
      %444 = vmatpush1.bf16.msra.mxu0 %v400
      %445 = vmatprep.subr.bf16.mxu0 %v404
      %446 = vmatpush1.bf16.msra.mxu0 %v403
      %447 = vmatprep.subr.bf16.mxu0 %v407
      %448 = vmatpush1.bf16.msra.mxu0 %v406
      %449 = vmatprep.subr.bf16.mxu0 0
      %450 = vmatpush1.bf16.msra.mxu0 0
      %451 = vmatprep.subr.bf16.mxu0 0
      %452 = vmatpush1.bf16.msra.mxu0 0
      %453 = vmatprep.subr.bf16.mxu0 0
      %454 = vmatpush1.bf16.msra.mxu0 0
      %455 = vmatprep.subr.bf16.mxu0 0
      %456 = vmatpush1.bf16.msra.mxu0 0
      %457 = vmatprep.subr.bf16.mxu0 0
      %458 = vmatpush1.bf16.msra.mxu0 0
      %459 = vmatprep.subr.bf16.mxu0 0
      %460 = vmatpush1.bf16.msra.mxu0 0
      %461 = vmatprep.subr.bf16.mxu0 0
      %462 = vmatpush1.bf16.msra.mxu0 0
      %463 = vmatprep.subr.bf16.mxu0 0
      %464 = vmatpush1.bf16.msra.mxu0 0
      %465 = vmatprep.mubr.bf16.mxu0 0
      %466 = vmatmul.mubr.bf16.gmra.mrb[0].mxu0 %v255
      %v467 = vpop.f32.mrb[0].mxu0
      %v468 = vadd.f32 %v293, %v467
      %v469 = vpop.f32.mrb[0].mxu0
      %v470 = vadd.f32 %v297, %v469
      %v471 = vpop.f32.mrb[0].mxu0
      %v472 = vpop.f32.mrb[0].mxu0
      %473 = vdwg.mxu0
      %474 = vmatprep.subr.bf16.mxu0 0
      %475 = vmatpush1.bf16.msra.mxu0 %v387
      %476 = vmatprep.subr.bf16.mxu0 0
      %477 = vmatpush1.bf16.msra.mxu0 %v390
      %478 = vmatprep.subr.bf16.mxu0 0
      %479 = vmatpush1.bf16.msra.mxu0 %v393
      %480 = vmatprep.subr.bf16.mxu0 0
      %481 = vmatpush1.bf16.msra.mxu0 %v396
      %482 = vmatprep.subr.bf16.mxu0 0
      %483 = vmatpush1.bf16.msra.mxu0 %v399
      %484 = vmatprep.subr.bf16.mxu0 0
      %485 = vmatpush1.bf16.msra.mxu0 %v402
      %486 = vmatprep.subr.bf16.mxu0 0
      %487 = vmatpush1.bf16.msra.mxu0 %v405
      %488 = vmatprep.subr.bf16.mxu0 0
      %489 = vmatpush1.bf16.msra.mxu0 %v408
      %490 = vmatprep.subr.bf16.mxu0 0
      %491 = vmatpush1.bf16.msra.mxu0 0
      %492 = vmatprep.subr.bf16.mxu0 0
      %493 = vmatpush1.bf16.msra.mxu0 0
      %494 = vmatprep.subr.bf16.mxu0 0
      %495 = vmatpush1.bf16.msra.mxu0 0
      %496 = vmatprep.subr.bf16.mxu0 0
      %497 = vmatpush1.bf16.msra.mxu0 0
      %498 = vmatprep.subr.bf16.mxu0 0
      %499 = vmatpush1.bf16.msra.mxu0 0
      %500 = vmatprep.subr.bf16.mxu0 0
      %501 = vmatpush1.bf16.msra.mxu0 0
      %502 = vmatprep.subr.bf16.mxu0 0
      %503 = vmatpush1.bf16.msra.mxu0 0
      %504 = vmatprep.subr.bf16.mxu0 0
      %505 = vmatpush1.bf16.msra.mxu0 0
      %506 = vmatprep.mubr.bf16.mxu0 0
      %507 = vmatmul.mubr.bf16.gmra.mrb[0].mxu0 %v255
      %v508 = vpop.f32.mrb[0].mxu0
      %v509 = vadd.f32 %v301, %v508
      %v510 = vpop.f32.mrb[0].mxu0
      %v511 = vpop.f32.mrb[0].mxu0
      %v512 = vpop.f32.mrb[0].mxu0
      %513 = vdwg.mxu0
      %v514 = vld [vmem:[%s235] sm:$0xff]
      %v515 = vld [vmem:[%s235 + $0x8] sm:$0xff]
      %v516 = vld [vmem:[%s235 + $0x10] sm:$0xff]
      %v517 = vadd.f32 %v514, %v468
      %v518 = vxor.u32 %v517, 2147483648
      %v519 = vmul.f32 %v518, 1.442695
      %v520 = vpow.pop %v519
      %v521 = vadd.f32 %v520, 1.0
      %v522 = vrcp.pop %v521
      %v523 = vmul.f32 1.0, %v522
      %v524 = vadd.f32 %v515, %v470
      %v525 = vxor.u32 %v524, 2147483648
      %v526 = vmul.f32 %v525, 1.442695
      %v527 = vpow.pop %v526
      %v528 = vadd.f32 %v527, 1.0
      %v529 = vrcp.pop %v528
      %v530 = vmul.f32 1.0, %v529
      %v531 = vmul.f32 %v523, %v509
      %v532 = vadd.f32 %v516, %v531
      %v533 = vtanh.pop %v532
      %v534 = vsub.f32 1.0, %v530
      %v535 = vmul.f32 %v534, %v533
      %v536 = vmul.f32 %v530, %v254
      %v537 = vadd.f32 %v535, %v536
      %538 = vst [vmem:[#allocation2] sm:$0xff] %v537
      %539 = vst [vmem:[%s246] sm:$0xff] %v537
      %p540 = scmp.lt.s32.totalorder %s20, 7
      %s541 = scalar_select %p540, %s20, 7
      %p542 = scmp.lt.s32.totalorder %s19, 0
      %s543 = scalar_select %p542, %s19, 0
      %s544 = sadd.s32 %s543, %s541
      %s545 = smul.addr %s544, 8
      %s546 = scalar_lea.vmem %s4, %s545
      // Predicated region
      $region41: #{_lambda_.10} parent=35 // pred_check
        %p547 = pneg %p143
      $region42: #{_lambda_.10} parent=35 // pred_check_branch
        %549 = sbr.rel (%p547) target = $region44
      $region43: #{_lambda_.10} parent=35 // pred_region
        _
      $region44: #{_lambda_.10} parent=35 // pred_fallthru
        _
    $region36: #{_lambda_.10} parent=5 // pred_fallthru
      _
    %p550 = scmp.le.s32.totalorder 2, %s10
    // Predicated region
    $region45: #{_lambda_.10} parent=5 // pred_check
      %p551 = pneg %p550
    $region46: #{_lambda_.10} parent=5 // pred_check_branch
      %553 = sbr.rel (%p551) target = $region48
    $region47: #{_lambda_.10} parent=5 // pred_region
      %s554 = ssub.s32 %s10, 2
      // Predicated region
      $region49: #{_lambda_.10} parent=47 // pred_check
        %p555 = pneg %p149
      $region50: #{_lambda_.10} parent=47 // pred_check_branch
        %557 = sbr.rel (%p555) target = $region52
      $region51: #{_lambda_.10} parent=47 // pred_region
        %p558 = scmp.lt.s32.totalorder %s22, 7
        %s559 = scalar_select %p558, %s22, 7
        %p560 = scmp.lt.s32.totalorder %s21, 0
        %s561 = scalar_select %p560, %s21, 0
        %s562 = sadd.s32 %s561, %s559
        %s563 = smul.addr %s562, 8
        %s564 = scalar_lea.vmem %s4, %s563
      $region52: #{_lambda_.10} parent=47 // pred_fallthru
        _
    $region48: #{_lambda_.10} parent=5 // pred_fallthru
      _
  $region6: #{_lambda_.10} parent=0 // loop_footer
    %s14 = sadd.s32 1, %s10
  $region7: #{_lambda_.10} parent=0 // loop_footer_branch
    %9 = sbr.rel target = $region3
  $region8: #{_lambda_.10} parent=0 // loop_exit
    _

// kernel: _lambda_.13
$region0: #{_lambda_.13}
  #allocation0 [shape = 'u32[]', space=smem, size = 0x4, offset = 0x4, fixed_abs, tag = 'smem constant byte address 0x4 - core index']
  #allocation1 [shape = 'u32[144,128]{1,0:T(1,128)}', space=vmem, size = 0x12000, scoped, tag = 'internal scratch']
  %s0 = inlined_call_operand.vmem [shape: f32[64,256], index: 0, kind: input, shape index: {}]
  %s1 = inlined_call_operand.vmem [shape: bf16[256,384], index: 1, kind: input, shape index: {}]
  %s2 = inlined_call_operand.vmem [shape: f32[1,384], index: 2, kind: input, shape index: {}]
  %s3 = inlined_call_operand.vmem [shape: f32[64,384], index: 3, kind: output, shape index: {}]
  %s4 = sld [smem:[#allocation0]]
  $region22: #{_lambda_.13} parent=0
    _
  %s6 = ssub.s32 1, %s4
  %s7 = scalar_select 0, %s6, %s4
  // Predicated region
  $region2: #{_lambda_.13} parent=0 // pred_check
    _
  $region3: #{_lambda_.13} parent=0 // pred_check_branch
    %9 = sbr.rel (0) target = $region5
  $region4: #{_lambda_.13} parent=0 // pred_region
    _
  $region5: #{_lambda_.13} parent=0 // pred_fallthru
    _
  // Predicated region
  $region6: #{_lambda_.13} parent=0 // pred_check
    _
  $region7: #{_lambda_.13} parent=0 // pred_check_branch
    %11 = sbr.rel (0) target = $region9
  $region8: #{_lambda_.13} parent=0 // pred_region
    _
  $region9: #{_lambda_.13} parent=0 // pred_fallthru
    _
  // Predicated region
  $region10: #{_lambda_.13} parent=0 // pred_check
    _
  $region11: #{_lambda_.13} parent=0 // pred_check_branch
    %13 = sbr.rel (0) target = $region13
  $region12: #{_lambda_.13} parent=0 // pred_region
    _
  $region13: #{_lambda_.13} parent=0 // pred_fallthru
    _
  %v15 = vld [vmem:[%s0] sm:$0xff]
  %v16 = vld [vmem:[%s0 + $0x8] sm:$0xff]
  %v17 = vld [vmem:[%s0 + $0x10] sm:$0xff]
  %v18 = vld [vmem:[%s0 + $0x18] sm:$0xff]
  %v19 = vld [vmem:[%s0 + $0x20] sm:$0xff]
  %v20 = vld [vmem:[%s0 + $0x28] sm:$0xff]
  %v21 = vld [vmem:[%s0 + $0x30] sm:$0xff]
  %v22 = vld [vmem:[%s0 + $0x38] sm:$0xff]
  %v23 = vld [vmem:[%s0 + $0x40] sm:$0xff]
  %v24 = vld [vmem:[%s0 + $0x48] sm:$0xff]
  %v25 = vld [vmem:[%s0 + $0x50] sm:$0xff]
  %v26 = vld [vmem:[%s0 + $0x58] sm:$0xff]
  %v27 = vld [vmem:[%s0 + $0x60] sm:$0xff]
  %v28 = vld [vmem:[%s0 + $0x68] sm:$0xff]
  %v29 = vld [vmem:[%s0 + $0x70] sm:$0xff]
  %v30 = vld [vmem:[%s0 + $0x78] sm:$0xff]
  %v31 = vpack.c.bf16 %v17, %v15
  %v32 = vpack.c.bf16 %v18, %v16
  %v33 = vpack.c.bf16 %v21, %v19
  %v34 = vpack.c.bf16 %v22, %v20
  %v35 = vpack.c.bf16 %v25, %v23
  %v36 = vpack.c.bf16 %v26, %v24
  %v37 = vpack.c.bf16 %v29, %v27
  %v38 = vpack.c.bf16 %v30, %v28
  %v39 = vld [vmem:[%s1] sm:$0xff]
  %v40 = vld [vmem:[%s1 + $0x8] sm:$0xf]
  %v41 = vld [vmem:[%s1 + $0xc] sm:$0xff]
  %v42 = vld [vmem:[%s1 + $0x14] sm:$0xf]
  %v43 = vld [vmem:[%s1 + $0x18] sm:$0xff]
  %v44 = vld [vmem:[%s1 + $0x20] sm:$0xf]
  %v45 = vld [vmem:[%s1 + $0x24] sm:$0xff]
  %v46 = vld [vmem:[%s1 + $0x2c] sm:$0xf]
  %v47 = vld [vmem:[%s1 + $0x30] sm:$0xff]
  %v48 = vld [vmem:[%s1 + $0x38] sm:$0xf]
  %v49 = vld [vmem:[%s1 + $0x3c] sm:$0xff]
  %v50 = vld [vmem:[%s1 + $0x44] sm:$0xf]
  %v51 = vld [vmem:[%s1 + $0x48] sm:$0xff]
  %v52 = vld [vmem:[%s1 + $0x50] sm:$0xf]
  %v53 = vld [vmem:[%s1 + $0x54] sm:$0xff]
  %v54 = vld [vmem:[%s1 + $0x5c] sm:$0xf]
  %v55 = vld [vmem:[%s1 + $0x60] sm:$0xff]
  %v56 = vld [vmem:[%s1 + $0x68] sm:$0xf]
  %v57 = vld [vmem:[%s1 + $0x6c] sm:$0xff]
  %v58 = vld [vmem:[%s1 + $0x74] sm:$0xf]
  %v59 = vld [vmem:[%s1 + $0x78] sm:$0xff]
  %v60 = vld [vmem:[%s1 + $0x80] sm:$0xf]
  %v61 = vld [vmem:[%s1 + $0x84] sm:$0xff]
  %v62 = vld [vmem:[%s1 + $0x8c] sm:$0xf]
  %v63 = vld [vmem:[%s1 + $0x90] sm:$0xff]
  %v64 = vld [vmem:[%s1 + $0x98] sm:$0xf]
  %v65 = vld [vmem:[%s1 + $0x9c] sm:$0xff]
  %v66 = vld [vmem:[%s1 + $0xa4] sm:$0xf]
  %v67 = vld [vmem:[%s1 + $0xa8] sm:$0xff]
  %v68 = vld [vmem:[%s1 + $0xb0] sm:$0xf]
  %v69 = vld [vmem:[%s1 + $0xb4] sm:$0xff]
  %v70 = vld [vmem:[%s1 + $0xbc] sm:$0xf]
  %v71 = vld [vmem:[%s1 + $0xc0] sm:$0xff]
  %v72 = vld [vmem:[%s1 + $0xc8] sm:$0xf]
  %v73 = vld [vmem:[%s1 + $0xcc] sm:$0xff]
  %v74 = vld [vmem:[%s1 + $0xd4] sm:$0xf]
  %v75 = vld [vmem:[%s1 + $0xd8] sm:$0xff]
  %v76 = vld [vmem:[%s1 + $0xe0] sm:$0xf]
  %v77 = vld [vmem:[%s1 + $0xe4] sm:$0xff]
  %v78 = vld [vmem:[%s1 + $0xec] sm:$0xf]
  %v79 = vld [vmem:[%s1 + $0xf0] sm:$0xff]
  %v80 = vld [vmem:[%s1 + $0xf8] sm:$0xf]
  %v81 = vld [vmem:[%s1 + $0xfc] sm:$0xff]
  %v82 = vld [vmem:[%s1 + $0x104] sm:$0xf]
  %v83 = vld [vmem:[%s1 + $0x108] sm:$0xff]
  %v84 = vld [vmem:[%s1 + $0x110] sm:$0xf]
  %v85 = vld [vmem:[%s1 + $0x114] sm:$0xff]
  %v86 = vld [vmem:[%s1 + $0x11c] sm:$0xf]
  %v87 = vld [vmem:[%s1 + $0x120] sm:$0xff]
  %v88 = vld [vmem:[%s1 + $0x128] sm:$0xf]
  %v89 = vld [vmem:[%s1 + $0x12c] sm:$0xff]
  %v90 = vld [vmem:[%s1 + $0x134] sm:$0xf]
  %v91 = vld [vmem:[%s1 + $0x138] sm:$0xff]
  %v92 = vld [vmem:[%s1 + $0x140] sm:$0xf]
  %v93 = vld [vmem:[%s1 + $0x144] sm:$0xff]
  %v94 = vld [vmem:[%s1 + $0x14c] sm:$0xf]
  %v95 = vld [vmem:[%s1 + $0x150] sm:$0xff]
  %v96 = vld [vmem:[%s1 + $0x158] sm:$0xf]
  %v97 = vld [vmem:[%s1 + $0x15c] sm:$0xff]
  %v98 = vld [vmem:[%s1 + $0x164] sm:$0xf]
  %v99 = vld [vmem:[%s1 + $0x168] sm:$0xff]
  %v100 = vld [vmem:[%s1 + $0x170] sm:$0xf]
  %v101 = vld [vmem:[%s1 + $0x174] sm:$0xff]
  %v102 = vld [vmem:[%s1 + $0x17c] sm:$0xf]
  %v103 = vld [vmem:[%s2] sm:$0x7]
  %v105 = vlaneseq
  %v106 = vshrl.u32 %v105, 7
  %v107 = vsub.s32 0, %v106
  %v108 = vrot.slane %v103, %v107
  %v109 = vlaneseq
  %v110 = vshrl.u32 %v109, 7
  %v111 = vsub.s32 1, %v110
  %v112 = vrot.slane %v103, %v111
  %v113 = vlaneseq
  %v114 = vshrl.u32 %v113, 7
  %v115 = vsub.s32 2, %v114
  %v116 = vrot.slane %v103, %v115
  %v184 = vunpack.c.l.b16 %v39
  %v185 = vunpack.c.h.b16 %v39
  %v186 = vunpack.c.l.b16 %v40
  %v187 = vunpack.c.l.b16 %v41
  %v188 = vunpack.c.h.b16 %v41
  %v189 = vunpack.c.l.b16 %v42
  %v190 = vunpack.c.l.b16 %v43
  %v191 = vunpack.c.h.b16 %v43
  %v192 = vunpack.c.l.b16 %v44
  %v193 = vunpack.c.l.b16 %v45
  %v194 = vunpack.c.h.b16 %v45
  %v195 = vunpack.c.l.b16 %v46
  %v196 = vunpack.c.l.b16 %v47
  %v197 = vunpack.c.h.b16 %v47
  %v198 = vunpack.c.l.b16 %v48
  %v199 = vunpack.c.l.b16 %v49
  %v200 = vunpack.c.h.b16 %v49
  %v201 = vunpack.c.l.b16 %v50
  %v202 = vunpack.c.l.b16 %v51
  %v203 = vunpack.c.h.b16 %v51
  %v204 = vunpack.c.l.b16 %v52
  %v205 = vunpack.c.l.b16 %v53
  %v206 = vunpack.c.h.b16 %v53
  %v207 = vunpack.c.l.b16 %v54
  %v208 = vunpack.c.l.b16 %v55
  %v209 = vunpack.c.h.b16 %v55
  %v210 = vunpack.c.l.b16 %v56
  %v211 = vunpack.c.l.b16 %v57
  %v212 = vunpack.c.h.b16 %v57
  %v213 = vunpack.c.l.b16 %v58
  %v214 = vunpack.c.l.b16 %v59
  %v215 = vunpack.c.h.b16 %v59
  %v216 = vunpack.c.l.b16 %v60
  %v217 = vunpack.c.l.b16 %v61
  %v218 = vunpack.c.h.b16 %v61
  %v219 = vunpack.c.l.b16 %v62
  %v220 = vunpack.c.l.b16 %v63
  %v221 = vunpack.c.h.b16 %v63
  %v222 = vunpack.c.l.b16 %v64
  %v223 = vunpack.c.l.b16 %v65
  %v224 = vunpack.c.h.b16 %v65
  %v225 = vunpack.c.l.b16 %v66
  %v226 = vunpack.c.l.b16 %v67
  %v227 = vunpack.c.h.b16 %v67
  %v228 = vunpack.c.l.b16 %v68
  %v229 = vunpack.c.l.b16 %v69
  %v230 = vunpack.c.h.b16 %v69
  %v231 = vunpack.c.l.b16 %v70
  %v232 = vunpack.c.l.b16 %v71
  %v233 = vunpack.c.h.b16 %v71
  %v234 = vunpack.c.l.b16 %v72
  %v235 = vunpack.c.l.b16 %v73
  %v236 = vunpack.c.h.b16 %v73
  %v237 = vunpack.c.l.b16 %v74
  %v238 = vunpack.c.l.b16 %v75
  %v239 = vunpack.c.h.b16 %v75
  %v240 = vunpack.c.l.b16 %v76
  %v241 = vunpack.c.l.b16 %v77
  %v242 = vunpack.c.h.b16 %v77
  %v243 = vunpack.c.l.b16 %v78
  %v244 = vunpack.c.l.b16 %v79
  %v245 = vunpack.c.h.b16 %v79
  %v246 = vunpack.c.l.b16 %v80
  %v247 = vunpack.c.l.b16 %v81
  %v248 = vunpack.c.h.b16 %v81
  %v249 = vunpack.c.l.b16 %v82
  %v250 = vunpack.c.l.b16 %v83
  %v251 = vunpack.c.h.b16 %v83
  %v252 = vunpack.c.l.b16 %v84
  %v253 = vunpack.c.l.b16 %v85
  %v254 = vunpack.c.h.b16 %v85
  %v255 = vunpack.c.l.b16 %v86
  %v256 = vunpack.c.l.b16 %v87
  %v257 = vunpack.c.h.b16 %v87
  %v258 = vunpack.c.l.b16 %v88
  %v259 = vunpack.c.l.b16 %v89
  %v260 = vunpack.c.h.b16 %v89
  %v261 = vunpack.c.l.b16 %v90
  %v262 = vunpack.c.l.b16 %v91
  %v263 = vunpack.c.h.b16 %v91
  %v264 = vunpack.c.l.b16 %v92
  %v265 = vunpack.c.l.b16 %v93
  %v266 = vunpack.c.h.b16 %v93
  %v267 = vunpack.c.l.b16 %v94
  %v268 = vunpack.c.l.b16 %v95
  %v269 = vunpack.c.h.b16 %v95
  %v270 = vunpack.c.l.b16 %v96
  %v271 = vunpack.c.l.b16 %v97
  %v272 = vunpack.c.h.b16 %v97
  %v273 = vunpack.c.l.b16 %v98
  %v274 = vunpack.c.l.b16 %v99
  %v275 = vunpack.c.h.b16 %v99
  %v276 = vunpack.c.l.b16 %v100
  %v277 = vunpack.c.l.b16 %v101
  %v278 = vunpack.c.h.b16 %v101
  %v279 = vunpack.c.l.b16 %v102
  %v280 = vpack.c.b16 %v187, %v184
  %v281 = vpack.c.b16 %v188, %v185
  %v282 = vpack.c.b16 %v189, %v186
  %v283 = vpack.c.b16 %v193, %v190
  %v284 = vpack.c.b16 %v194, %v191
  %v285 = vpack.c.b16 %v195, %v192
  %v286 = vpack.c.b16 %v199, %v196
  %v287 = vpack.c.b16 %v200, %v197
  %v288 = vpack.c.b16 %v201, %v198
  %v289 = vpack.c.b16 %v205, %v202
  %v290 = vpack.c.b16 %v206, %v203
  %v291 = vpack.c.b16 %v207, %v204
  %v292 = vpack.c.b16 %v211, %v208
  %v293 = vpack.c.b16 %v212, %v209
  %v294 = vpack.c.b16 %v213, %v210
  %v295 = vpack.c.b16 %v217, %v214
  %v296 = vpack.c.b16 %v218, %v215
  %v297 = vpack.c.b16 %v219, %v216
  %v298 = vpack.c.b16 %v223, %v220
  %v299 = vpack.c.b16 %v224, %v221
  %v300 = vpack.c.b16 %v225, %v222
  %v301 = vpack.c.b16 %v229, %v226
  %v302 = vpack.c.b16 %v230, %v227
  %v303 = vpack.c.b16 %v231, %v228
  %v304 = vpack.c.b16 %v235, %v232
  %v305 = vpack.c.b16 %v236, %v233
  %v306 = vpack.c.b16 %v237, %v234
  %v307 = vpack.c.b16 %v241, %v238
  %v308 = vpack.c.b16 %v242, %v239
  %v309 = vpack.c.b16 %v243, %v240
  %v310 = vpack.c.b16 %v247, %v244
  %v311 = vpack.c.b16 %v248, %v245
  %v312 = vpack.c.b16 %v249, %v246
  %v313 = vpack.c.b16 %v253, %v250
  %v314 = vpack.c.b16 %v254, %v251
  %v315 = vpack.c.b16 %v255, %v252
  %v316 = vpack.c.b16 %v259, %v256
  %v317 = vpack.c.b16 %v260, %v257
  %v318 = vpack.c.b16 %v261, %v258
  %v319 = vpack.c.b16 %v265, %v262
  %v320 = vpack.c.b16 %v266, %v263
  %v321 = vpack.c.b16 %v267, %v264
  %v322 = vpack.c.b16 %v271, %v268
  %v323 = vpack.c.b16 %v272, %v269
  %v324 = vpack.c.b16 %v273, %v270
  %v325 = vpack.c.b16 %v277, %v274
  %v326 = vpack.c.b16 %v278, %v275
  %v327 = vpack.c.b16 %v279, %v276
  %376 = vmatprep.subr.bf16.mxu0 %v281
  %377 = vmatpush1.bf16.msra.mxu0 %v280
  %378 = vmatprep.subr.bf16.mxu0 %v284
  %379 = vmatpush1.bf16.msra.mxu0 %v283
  %380 = vmatprep.subr.bf16.mxu0 %v287
  %381 = vmatpush1.bf16.msra.mxu0 %v286
  %382 = vmatprep.subr.bf16.mxu0 %v290
  %383 = vmatpush1.bf16.msra.mxu0 %v289
  %384 = vmatprep.subr.bf16.mxu0 %v293
  %385 = vmatpush1.bf16.msra.mxu0 %v292
  %386 = vmatprep.subr.bf16.mxu0 %v296
  %387 = vmatpush1.bf16.msra.mxu0 %v295
  %388 = vmatprep.subr.bf16.mxu0 %v299
  %389 = vmatpush1.bf16.msra.mxu0 %v298
  %390 = vmatprep.subr.bf16.mxu0 %v302
  %391 = vmatpush1.bf16.msra.mxu0 %v301
  %392 = vmatprep.subr.bf16.mxu0 %v305
  %393 = vmatpush1.bf16.msra.mxu0 %v304
  %394 = vmatprep.subr.bf16.mxu0 %v308
  %395 = vmatpush1.bf16.msra.mxu0 %v307
  %396 = vmatprep.subr.bf16.mxu0 %v311
  %397 = vmatpush1.bf16.msra.mxu0 %v310
  %398 = vmatprep.subr.bf16.mxu0 %v314
  %399 = vmatpush1.bf16.msra.mxu0 %v313
  %400 = vmatprep.subr.bf16.mxu0 %v317
  %401 = vmatpush1.bf16.msra.mxu0 %v316
  %402 = vmatprep.subr.bf16.mxu0 %v320
  %403 = vmatpush1.bf16.msra.mxu0 %v319
  %404 = vmatprep.subr.bf16.mxu0 %v323
  %405 = vmatpush1.bf16.msra.mxu0 %v322
  %406 = vmatprep.subr.bf16.mxu0 %v326
  %407 = vmatpush1.bf16.msra.mxu0 %v325
  %408 = vmatprep.mubr.bf16.mxu0 %v32
  %409 = vmatmul.mubr.bf16.gmra.mrb[0].mxu0 %v31
  %v410 = vpop.f32.mrb[0].mxu0
  %v411 = vadd.f32 %v108, %v410
  %v412 = vpop.f32.mrb[0].mxu0
  %v413 = vadd.f32 %v112, %v412
  %v414 = vpop.f32.mrb[0].mxu0
  %v415 = vadd.f32 %v108, %v414
  %v416 = vpop.f32.mrb[0].mxu0
  %v417 = vadd.f32 %v112, %v416
  %418 = vmatprep.mubr.bf16.mxu0 %v34
  %419 = vmatmul.mubr.bf16.gmra.mrb[0].mxu0 %v33
  %v420 = vpop.f32.mrb[0].mxu0
  %v421 = vadd.f32 %v108, %v420
  %v422 = vpop.f32.mrb[0].mxu0
  %v423 = vadd.f32 %v112, %v422
  %v424 = vpop.f32.mrb[0].mxu0
  %v425 = vadd.f32 %v108, %v424
  %v426 = vpop.f32.mrb[0].mxu0
  %v427 = vadd.f32 %v112, %v426
  %428 = vmatprep.mubr.bf16.mxu0 %v36
  %429 = vmatmul.mubr.bf16.gmra.mrb[0].mxu0 %v35
  %v430 = vpop.f32.mrb[0].mxu0
  %v431 = vadd.f32 %v108, %v430
  %v432 = vpop.f32.mrb[0].mxu0
  %v433 = vadd.f32 %v112, %v432
  %v434 = vpop.f32.mrb[0].mxu0
  %v435 = vadd.f32 %v108, %v434
  %v436 = vpop.f32.mrb[0].mxu0
  %v437 = vadd.f32 %v112, %v436
  %438 = vmatprep.mubr.bf16.mxu0 %v38
  %439 = vmatmul.mubr.bf16.gmra.mrb[0].mxu0 %v37
  %v440 = vpop.f32.mrb[0].mxu0
  %v441 = vadd.f32 %v108, %v440
  %v442 = vpop.f32.mrb[0].mxu0
  %v443 = vadd.f32 %v112, %v442
  %v444 = vpop.f32.mrb[0].mxu0
  %v445 = vadd.f32 %v108, %v444
  %v446 = vpop.f32.mrb[0].mxu0
  %v447 = vadd.f32 %v112, %v446
  %448 = vdwg.mxu0
  %449 = vmatprep.subr.bf16.mxu0 0
  %450 = vmatpush1.bf16.msra.mxu0 %v282
  %451 = vmatprep.subr.bf16.mxu0 0
  %452 = vmatpush1.bf16.msra.mxu0 %v285
  %453 = vmatprep.subr.bf16.mxu0 0
  %454 = vmatpush1.bf16.msra.mxu0 %v288
  %455 = vmatprep.subr.bf16.mxu0 0
  %456 = vmatpush1.bf16.msra.mxu0 %v291
  %457 = vmatprep.subr.bf16.mxu0 0
  %458 = vmatpush1.bf16.msra.mxu0 %v294
  %459 = vmatprep.subr.bf16.mxu0 0
  %460 = vmatpush1.bf16.msra.mxu0 %v297
  %461 = vmatprep.subr.bf16.mxu0 0
  %462 = vmatpush1.bf16.msra.mxu0 %v300
  %463 = vmatprep.subr.bf16.mxu0 0
  %464 = vmatpush1.bf16.msra.mxu0 %v303
  %465 = vmatprep.subr.bf16.mxu0 0
  %466 = vmatpush1.bf16.msra.mxu0 %v306
  %467 = vmatprep.subr.bf16.mxu0 0
  %468 = vmatpush1.bf16.msra.mxu0 %v309
  %469 = vmatprep.subr.bf16.mxu0 0
  %470 = vmatpush1.bf16.msra.mxu0 %v312
  %471 = vmatprep.subr.bf16.mxu0 0
  %472 = vmatpush1.bf16.msra.mxu0 %v315
  %473 = vmatprep.subr.bf16.mxu0 0
  %474 = vmatpush1.bf16.msra.mxu0 %v318
  %475 = vmatprep.subr.bf16.mxu0 0
  %476 = vmatpush1.bf16.msra.mxu0 %v321
  %477 = vmatprep.subr.bf16.mxu0 0
  %478 = vmatpush1.bf16.msra.mxu0 %v324
  %479 = vmatprep.subr.bf16.mxu0 0
  %480 = vmatpush1.bf16.msra.mxu0 %v327
  %481 = vmatprep.mubr.bf16.mxu0 %v32
  %482 = vmatmul.mubr.bf16.gmra.mrb[0].mxu0 %v31
  %v483 = vpop.f32.mrb[0].mxu0
  %v484 = vadd.f32 %v116, %v483
  %v485 = vpop.f32.mrb[0].mxu0
  %v486 = vpop.f32.mrb[0].mxu0
  %v487 = vadd.f32 %v116, %v486
  %v488 = vpop.f32.mrb[0].mxu0
  %489 = vmatprep.mubr.bf16.mxu0 %v34
  %490 = vmatmul.mubr.bf16.gmra.mrb[0].mxu0 %v33
  %v491 = vpop.f32.mrb[0].mxu0
  %v492 = vadd.f32 %v116, %v491
  %v493 = vpop.f32.mrb[0].mxu0
  %v494 = vpop.f32.mrb[0].mxu0
  %v495 = vadd.f32 %v116, %v494
  %v496 = vpop.f32.mrb[0].mxu0
  %497 = vmatprep.mubr.bf16.mxu0 %v36
  %498 = vmatmul.mubr.bf16.gmra.mrb[0].mxu0 %v35
  %v499 = vpop.f32.mrb[0].mxu0
  %v500 = vadd.f32 %v116, %v499
  %v501 = vpop.f32.mrb[0].mxu0
  %v502 = vpop.f32.mrb[0].mxu0
  %v503 = vadd.f32 %v116, %v502
  %v504 = vpop.f32.mrb[0].mxu0
  %505 = vmatprep.mubr.bf16.mxu0 %v38
  %506 = vmatmul.mubr.bf16.gmra.mrb[0].mxu0 %v37
  %v507 = vpop.f32.mrb[0].mxu0
  %v508 = vadd.f32 %v116, %v507
  %v509 = vpop.f32.mrb[0].mxu0
  %v510 = vpop.f32.mrb[0].mxu0
  %v511 = vadd.f32 %v116, %v510
  %v512 = vpop.f32.mrb[0].mxu0
  %513 = vdwg.mxu0
  %514 = vst [vmem:[%s3] sm:$0xff] %v411
  %515 = vst [vmem:[%s3 + $0x8] sm:$0xff] %v413
  %516 = vst [vmem:[%s3 + $0x10] sm:$0xff] %v484
  %517 = vst [vmem:[%s3 + $0x18] sm:$0xff] %v415
  %518 = vst [vmem:[%s3 + $0x20] sm:$0xff] %v417
  %519 = vst [vmem:[%s3 + $0x28] sm:$0xff] %v487
  %520 = vst [vmem:[%s3 + $0x30] sm:$0xff] %v421
  %521 = vst [vmem:[%s3 + $0x38] sm:$0xff] %v423
  %522 = vst [vmem:[%s3 + $0x40] sm:$0xff] %v492
  %523 = vst [vmem:[%s3 + $0x48] sm:$0xff] %v425
  %524 = vst [vmem:[%s3 + $0x50] sm:$0xff] %v427
  %525 = vst [vmem:[%s3 + $0x58] sm:$0xff] %v495
  %526 = vst [vmem:[%s3 + $0x60] sm:$0xff] %v431
  %527 = vst [vmem:[%s3 + $0x68] sm:$0xff] %v433
  %528 = vst [vmem:[%s3 + $0x70] sm:$0xff] %v500
  %529 = vst [vmem:[%s3 + $0x78] sm:$0xff] %v435
  %530 = vst [vmem:[%s3 + $0x80] sm:$0xff] %v437
  %531 = vst [vmem:[%s3 + $0x88] sm:$0xff] %v503
  %532 = vst [vmem:[%s3 + $0x90] sm:$0xff] %v441
  %533 = vst [vmem:[%s3 + $0x98] sm:$0xff] %v443
  %534 = vst [vmem:[%s3 + $0xa0] sm:$0xff] %v508
  %535 = vst [vmem:[%s3 + $0xa8] sm:$0xff] %v445
  %536 = vst [vmem:[%s3 + $0xb0] sm:$0xff] %v447
  %537 = vst [vmem:[%s3 + $0xb8] sm:$0xff] %v511
  // Predicated region
  $region14: #{_lambda_.13} parent=0 // pred_check
    _
  $region15: #{_lambda_.13} parent=0 // pred_check_branch
    %539 = sbr.rel (0) target = $region17
  $region16: #{_lambda_.13} parent=0 // pred_region
    _
  $region17: #{_lambda_.13} parent=0 // pred_fallthru
    _
  // Predicated region
  $region18: #{_lambda_.13} parent=0 // pred_check
    _
  $region19: #{_lambda_.13} parent=0 // pred_check_branch
    %541 = sbr.rel (0) target = $region21
  $region20: #{_lambda_.13} parent=0 // pred_region
    _
  $region21: #{_lambda_.13} parent=0 // pred_fallthru
    _

</llo_original>
